<compile_context>
chip_gen: v7x
topology: tpu7x:2x2x1
jax: 0.10.0
libtpu: 0.0.40
codegen_flags: <defaults>
</compile_context>

<pallas_src>
import functools

import jax
import jax.numpy as jnp
import numpy as np
from jax.experimental import pallas as pl
from jax.experimental.pallas import tpu as pltpu

KTYPES = ("h", "d", "b", "v")


def _round_up(x, m):
    return ((x + m - 1) // m) * m


# ----------------------------- Pallas kernel ------------------------------ #
def _lut_kernel(idx_ref, w_ref, out_ref):
    # idx_ref: (1, 1, TP)  int32  — lane-dense flattened LUT indices
    # w_ref:   (4, up2, L3) bf16  — all 4 ktype tables, pre-transposed
    # out_ref: (1, up2, TP) f32   — gathered LUT values (lane-dense store)
    L3 = w_ref.shape[2]
    TP = idx_ref.shape[2]

    kt = pl.program_id(0) % 4                 # config ordering is r*4 + ktype
    w = w_ref[kt]                             # (up2, L3) bf16
    idx = idx_ref[0]                          # (1, TP) int32

    iota = jax.lax.broadcasted_iota(jnp.int32, (L3, TP), 0)      # (L3, TP)
    onehot = (iota == idx).astype(jnp.bfloat16)                  # exact 0/1
    # LUT gather as bf16 one-hot matmul on the MXU, f32 accumulation.
    out_ref[0] = jnp.dot(w, onehot, preferred_element_type=jnp.float32)


def _lut_gather(idx_all, w_t, tp):
    """idx_all: (n_cfg, 1, Pp) int32; w_t: (4, up2, L3) bf16."""
    n_cfg, _, Pp = idx_all.shape
    _, up2, L3 = w_t.shape
    n_tiles = Pp // tp

    flops = 2 * n_cfg * Pp * L3 * up2
    bytes_accessed = (idx_all.size * 4) + (w_t.size * 2) + (n_cfg * up2 * Pp * 4)

    return pl.pallas_call(
        _lut_kernel,
        out_shape=jax.ShapeDtypeStruct((n_cfg, up2, Pp), jnp.float32),
        grid=(n_cfg, n_tiles),
        in_specs=[
            pl.BlockSpec((1, 1, tp), lambda c, p: (c, 0, p)),
            # full table, constant block index -> resident in VMEM, no re-DMA
            pl.BlockSpec((4, up2, L3), lambda c, p: (0, 0, 0)),
        ],
        out_specs=pl.BlockSpec((1, up2, tp), lambda c, p: (c, 0, p)),
        compiler_params=pltpu.CompilerParams(
            dimension_semantics=("parallel", "parallel"),
            vmem_limit_bytes=32 * 1024 * 1024),
        cost_estimate=pl.CostEstimate(
            flops=flops, transcendentals=0, bytes_accessed=bytes_accessed),
    )(idx_all, w_t)


# ------------------------------- glue (JAX) -------------------------------- #
def _make_abc(xp, H, W, ktype):
    if ktype == "h":
        return xp[:, :, 0:H, 0:W], xp[:, :, 0:H, 1:1 + W], xp[:, :, 0:H, 2:2 + W]
    if ktype == "d":
        return xp[:, :, 0:H, 0:W], xp[:, :, 1:1 + H, 1:1 + W], xp[:, :, 2:2 + H, 2:2 + W]
    if ktype == "b":
        return xp[:, :, 0:H, 0:W], xp[:, :, 1:1 + H, 2:2 + W], xp[:, :, 2:2 + H, 1:1 + W]
    # "v"
    return xp[:, :, 0:H, 0:W], xp[:, :, 1:1 + H, 0:W], xp[:, :, 2:2 + H, 0:W]


def hdbvlut_forward(img_lr, weights, L, upscale=2, tp=1024):
    """img_lr: (N, C, H, W) int32 in [0, L); weights: (4, L**3, upscale**2) f32."""
    N, C, H, W = img_lr.shape
    up = upscale
    up2 = up * up
    P = N * C * H * W

    # lane-aligned pixel tile; pad flattened pixel count to a tile multiple
    tp = min(tp, _round_up(P, 128))
    Pp = _round_up(P, tp)

    # Build the 16 index planes: one rot90 + one replicate-pad per rotation,
    # shared across the 4 ktypes (config ordering: t = r*4 + ktype).
    idx_list, meta = [], []
    for r in (0, 1, 2, 3):
        x = jnp.rot90(img_lr, r, axes=(2, 3))
        Hr, Wr = x.shape[2], x.shape[3]
        xp = jnp.pad(x, ((0, 0), (0, 0), (0, 2), (0, 2)),
                     mode="edge").astype(jnp.int32)              # replicate pad
        for k in KTYPES:
            a, b, c = _make_abc(xp, Hr, Wr, k)
            idx_list.append((a * (L * L) + b * L + c).reshape(-1))
        meta.append((Hr, Wr))

    idx_all = jnp.stack(idx_list, 0)                             # (16, P)
    idx_all = jnp.pad(idx_all, ((0, 0), (0, Pp - P)))            # pad tail (sliced off)
    idx_all = idx_all[:, None, :]                                # (16, 1, Pp)

    # LUT tables: transpose to (4, up2, L3), bf16 for the MXU.
    w_t = jnp.transpose(weights, (0, 2, 1)).astype(jnp.bfloat16)

    vals = _lut_gather(idx_all, w_t, tp)                         # (16, up2, Pp) f32
    vals = vals.reshape(4, 4, up2, Pp).sum(axis=1)               # sum ktypes -> (4, up2, Pp)

    out = jnp.zeros((N, C, H * up, W * up), jnp.float32)
    for r, (Hr, Wr) in enumerate(meta):
        v = vals[r, :, :P].T.reshape(N, C, Hr, Wr, up, up)       # (P, up2) -> 6D
        tmp = v.transpose(0, 1, 2, 4, 3, 5).reshape(N, C, Hr * up, Wr * up)
        out = out + jnp.rot90(tmp, 4 - r, axes=(2, 3))
    return out / 4.0  # avg_factor = 4.0 (matches the PyTorch module exactly)


# ------------------------ pure-JAX reference (check) ----------------------- #
def hdbvlut_reference(img_lr, weights, L, upscale=2):
    N, C, H, W = img_lr.shape
    up = upscale
    out = jnp.zeros((N, C, H * up, W * up), jnp.float32)
    for ki, k in enumerate(KTYPES):
        w = weights[ki]
        for r in (0, 1, 2, 3):
            x = jnp.rot90(img_lr, r, axes=(2, 3))
            Hr, Wr = x.shape[2], x.shape[3]
            xp = jnp.pad(x, ((0, 0), (0, 0), (0, 2), (0, 2)),
                         mode="edge").astype(jnp.int32)
            a, b, c = _make_abc(xp, Hr, Wr, k)
            flat = a.reshape(-1) * (L * L) + b.reshape(-1) * L + c.reshape(-1)
            tmp = w[flat].reshape(N, C, Hr, Wr, up, up)
            tmp = tmp.transpose(0, 1, 2, 4, 3, 5).reshape(N, C, Hr * up, Wr * up)
            out = out + jnp.rot90(tmp, 4 - r, axes=(2, 3))
    return out / 4.0


# ---------------------------------- main ----------------------------------- #
if __name__ == "__main__":
    L, up = 8, 2                  # LUT resolution and upscale factor
    N, C, H, W = 2, 3, 16, 16     # small synthetic shapes (P=1536 -> 2 P-tiles)

    key = jax.random.PRNGKey(0)
    k_img, k_w = jax.random.split(key)
    img = jax.random.randint(k_img, (N, C, H, W), 0, L, dtype=jnp.int32)
    # deterministic synthetic LUT tables (h, d, b, v) stacked -> (4, L**3, up*up)
    weights = jax.random.normal(k_w, (4, L ** 3, up * up), dtype=jnp.float32)

    fwd = jax.jit(functools.partial(hdbvlut_forward, L=L, upscale=up))
    out = jax.block_until_ready(fwd(img, weights))
    assert out.shape == (N, C, H * up, W * up)

    # Exact check against a reference that uses the same bf16-rounded tables
    # (the one-hot is exact in bf16, so the kernel is bit-faithful to these).
    w_bf16 = weights.astype(jnp.bfloat16).astype(jnp.float32)
    ref_bf16 = hdbvlut_reference(img, w_bf16, L, up)
    np.testing.assert_allclose(np.asarray(out), np.asarray(ref_bf16),
                               rtol=1e-5, atol=1e-5)

    # Loose check against the original f32-weight module semantics
    # (difference is purely bf16 rounding of the LUT tables).
    ref_f32 = hdbvlut_reference(img, weights, L, up)
    np.testing.assert_allclose(np.asarray(out), np.asarray(ref_f32),
                               rtol=5e-2, atol=5e-2)

    print("KERNEL_OK")
</pallas_src>

<mosaic_0001>
module attributes {stable_mosaic.version = 11 : i64} {
  func.func @_lut_kernel(%arg0: i32, %arg1: i32, %arg2: memref<1x1x1024xi32, #tpu.memory_space<vmem>>, %arg3: memref<4x4x512xbf16, #tpu.memory_space<vmem>>, %arg4: memref<1x4x1024xf32, #tpu.memory_space<vmem>>) attributes {dimension_semantics = [#tpu.dimension_semantics<parallel>, #tpu.dimension_semantics<parallel>], iteration_bounds = array<i64: 16, 2>, scalar_prefetch = 0 : i64, scratch_operands = 0 : i64, tpu.core_type = #tpu.core_type<tc>, window_params = [{transform_indices = @transform_0, window_bounds = array<i64: 1, 1, 1024>}, {pipeline_mode = #tpu.pipeline_mode<synchronous>, transform_indices = @transform_1, window_bounds = array<i64: 4, 4, 512>}, {transform_indices = @transform_2, window_bounds = array<i64: 1, 4, 1024>}]} {
    %c4_i32 = arith.constant 4 : i32
    %c0_i32 = arith.constant 0 : i32
    %0 = arith.cmpi eq, %c4_i32, %c0_i32 : i32
    %c1_i32 = arith.constant 1 : i32
    %1 = arith.select %0, %c1_i32, %c4_i32 : i32
    %2 = arith.remsi %arg0, %1 : i32
    %c0_i32_0 = arith.constant 0 : i32
    %3 = arith.cmpi ne, %2, %c0_i32_0 : i32
    %c0_i32_1 = arith.constant 0 : i32
    %4 = arith.cmpi slt, %2, %c0_i32_1 : i32
    %c0_i32_2 = arith.constant 0 : i32
    %5 = arith.cmpi slt, %1, %c0_i32_2 : i32
    %6 = arith.xori %4, %5 : i1
    %7 = arith.andi %6, %3 : i1
    %8 = arith.addi %2, %1 : i32
    %9 = arith.select %7, %8, %2 : i32
    %10 = arith.index_cast %9 : i32 to index
    %c0 = arith.constant 0 : index
    %c0_3 = arith.constant 0 : index
    %11 = vector.load %arg3[%10, %c0, %c0_3] : memref<4x4x512xbf16, #tpu.memory_space<vmem>>, vector<1x4x512xbf16>
    %12 = vector.shape_cast %11 : vector<1x4x512xbf16> to vector<4x512xbf16>
    %c0_4 = arith.constant 0 : index
    %c0_5 = arith.constant 0 : index
    %c0_6 = arith.constant 0 : index
    %13 = vector.load %arg2[%c0_4, %c0_5, %c0_6] : memref<1x1x1024xi32, #tpu.memory_space<vmem>>, vector<1x1x1024xi32>
    %14 = vector.shape_cast %13 : vector<1x1x1024xi32> to vector<1x1024xi32>
    %15 = tpu.iota {dimensions = array<i32: 0>} : vector<512x1024xi32>
    %16 = vector.broadcast %14 : vector<1x1024xi32> to vector<512x1024xi32>
    %17 = arith.cmpi eq, %15, %16 : vector<512x1024xi32>
    %18 = arith.extui %17 : vector<512x1024xi1> to vector<512x1024xi32>
    %19 = arith.sitofp %18 : vector<512x1024xi32> to vector<512x1024xf32>
    %20 = arith.truncf %19 : vector<512x1024xf32> to vector<512x1024xbf16>
    %cst = arith.constant dense<0.000000e+00> : vector<4x1024xf32>
    %21 = tpu.matmul %12, %20, %cst {dimension_numbers = #tpu.dot_dimension_numbers<[1], [0], [0], [1], [0, 0, 1, 1], [], []>} : vector<4x512xbf16>, vector<512x1024xbf16>, vector<4x1024xf32> -> vector<4x1024xf32>
    %c0_7 = arith.constant 0 : index
    %c0_8 = arith.constant 0 : index
    %c0_9 = arith.constant 0 : index
    %22 = vector.load %arg4[%c0_7, %c0_8, %c0_9] : memref<1x4x1024xf32, #tpu.memory_space<vmem>>, vector<1x4x1024xf32>
    %23 = vector.shape_cast %22 : vector<1x4x1024xf32> to vector<4x1024xf32>
    %24 = vector.shape_cast %21 : vector<4x1024xf32> to vector<1x4x1024xf32>
    tpu.vector_store %arg4[%c0_7, %c0_8, %c0_9], %24 {strides = array<i32>} : memref<1x4x1024xf32, #tpu.memory_space<vmem>>, vector<1x4x1024xf32>,
    return
  }
  func.func @transform_0(%arg0: i32, %arg1: i32) -> (i32, i32, i32) {
    %c0_i32 = arith.constant 0 : i32
    %c0_i32_0 = arith.constant 0 : i32
    return %arg0, %c0_i32, %arg1 : i32, i32, i32
  }
  func.func @transform_1(%arg0: i32, %arg1: i32) -> (i32, i32, i32) {
    %c0_i32 = arith.constant 0 : i32
    %c0_i32_0 = arith.constant 0 : i32
    %c0_i32_1 = arith.constant 0 : i32
    %c0_i32_2 = arith.constant 0 : i32
    return %c0_i32, %c0_i32_0, %c0_i32_1 : i32, i32, i32
  }
  func.func @transform_2(%arg0: i32, %arg1: i32) -> (i32, i32, i32) {
    %c0_i32 = arith.constant 0 : i32
    %c0_i32_0 = arith.constant 0 : i32
    return %arg0, %c0_i32, %arg1 : i32, i32, i32
  }
}

</mosaic_0001>

<llo_original>
// kernel: reverse.2
$region0: #{reverse.2}
  %s0 = inlined_call_operand.vmem [shape: s32[2,3,1,16], index: 0, kind: input, shape index: {}]
  %s1 = inlined_call_operand.vmem [shape: s32[2,3,1,16], index: 1, kind: output, shape index: {}]
  %v2 = vlaneseq
  %v3 = vsub.s32 15, %v2
  %4 = vset.pattern.permute.xlu0 %v3
  $region1: #{reverse.2} parent=0
    #allocation0 [shape = 'u8[24576]{0}', space=vmem, size = 0x6000, scoped, tag = 'operand span for operand 0']
    #allocation1 [shape = 'u8[3072]{0}', space=vmem, size = 0xc00, scoped, tag = 'packed  for operand 0']
    #allocation2 [shape = 'u8[24576]{0}', space=vmem, size = 0x6000, scoped, tag = 'operand span for operand 1']
    #allocation3 [shape = 'u8[3072]{0}', space=vmem, size = 0xc00, scoped, tag = 'packed  for operand 1']
    // Predicated region
    $region2: #{reverse.2} parent=1 // pred_check
      _
    $region3: #{reverse.2} parent=1 // pred_check_branch
      %6 = sbr.rel (0) target = $region5
    $region4: #{reverse.2} parent=1 // pred_region
      // Predicated region
      $region6: #{reverse.2} parent=4 // pred_check
        _
      $region7: #{reverse.2} parent=4 // pred_check_branch
        %8 = sbr.rel target = $region9
      $region8: #{reverse.2} parent=4 // pred_region
        // Predicated region
        $region21: #{reverse.2} parent=8 // pred_check
          _
        $region22: #{reverse.2} parent=8 // pred_check_branch
          %23 = sbr.rel (0) target = $region24
        $region23: #{reverse.2} parent=8 // pred_region
          loop: start=0, step=1, limit=1
          $region25: #{reverse.2} parent=23 // loop_pre_header
            _
          $region26: #{reverse.2} parent=23 // loop_header
            %s26 = sphi 0, %s30
            %p27 = scmp.ge.s32.totalorder %s26, 1
            %s31 = sphi %s0, %s0
            %s32 = sphi [#allocation1], [#allocation1]
          $region27: #{reverse.2} parent=23 // loop_header_branch
            %29 = sbr.rel (%p27) target = $region31
          $region28: #{reverse.2} parent=23 // loop_body
            %v33 = vld [vmem:[%s31] sm:$0x3f]
            %34 = vst [vmem:[%s32] sm:$0x3f] %v33
          $region29: #{reverse.2} parent=23 // loop_footer
            %s30 = sadd.s32 1, %s26
          $region30: #{reverse.2} parent=23 // loop_footer_branch
            %25 = sbr.rel target = $region26
          $region31: #{reverse.2} parent=23 // loop_exit
            _
        $region24: #{reverse.2} parent=8 // pred_fallthru
          _
      $region9: #{reverse.2} parent=4 // pred_fallthru
        _
      // Predicated region
      $region10: #{reverse.2} parent=4 // pred_check
        _
      $region11: #{reverse.2} parent=4 // pred_check_branch
        %10 = sbr.rel (0) target = $region13
      $region12: #{reverse.2} parent=4 // pred_region
        loop: start=0, step=1, limit=1
        $region14: #{reverse.2} parent=12 // loop_pre_header
          _
        $region15: #{reverse.2} parent=12 // loop_header
          %s13 = sphi 0, %s17
          %p14 = scmp.ge.s32.totalorder %s13, 1
          %s18 = sphi %s0, %s0
          %s19 = sphi [#allocation1], [#allocation1]
        $region16: #{reverse.2} parent=12 // loop_header_branch
          %16 = sbr.rel (%p14) target = $region20
        $region17: #{reverse.2} parent=12 // loop_body
          %v20 = vld [vmem:[%s18] sm:$0x3f]
          %21 = vst [vmem:[%s19] sm:$0x3f] %v20
        $region18: #{reverse.2} parent=12 // loop_footer
          %s17 = sadd.s32 1, %s13
        $region19: #{reverse.2} parent=12 // loop_footer_branch
          %12 = sbr.rel target = $region15
        $region20: #{reverse.2} parent=12 // loop_exit
          _
      $region13: #{reverse.2} parent=4 // pred_fallthru
        _
    $region5: #{reverse.2} parent=1 // pred_fallthru
      _
    %35 = vnop
    %s37 = sshllo.u32 0, 1
    %s38 = smul.addr 1, 5
    %s39 = scalar_lea.vmem [#allocation1], %s38
    %v40 = vld [vmem:[%s39] sm:%s37]
    %s41 = scalar_lea.vmem [#allocation0], 40
    %42 = vst [vmem:[%s41] sm:%s37] %v40
    %s43 = smul.addr 1, 4
    %s44 = scalar_lea.vmem [#allocation1], %s43
    %v45 = vld [vmem:[%s44] sm:%s37]
    %s46 = scalar_lea.vmem [#allocation0], 32
    %47 = vst [vmem:[%s46] sm:%s37] %v45
    %s48 = smul.addr 1, 3
    %s49 = scalar_lea.vmem [#allocation1], %s48
    %v50 = vld [vmem:[%s49] sm:%s37]
    %s51 = scalar_lea.vmem [#allocation0], 24
    %52 = vst [vmem:[%s51] sm:%s37] %v50
    %s53 = smul.addr 1, 2
    %s54 = scalar_lea.vmem [#allocation1], %s53
    %v55 = vld [vmem:[%s54] sm:%s37]
    %s56 = scalar_lea.vmem [#allocation0], 16
    %57 = vst [vmem:[%s56] sm:%s37] %v55
    %s58 = scalar_lea.vmem [#allocation1], 1
    %v59 = vld [vmem:[%s58] sm:%s37]
    %s60 = scalar_lea.vmem [#allocation0], 8
    %61 = vst [vmem:[%s60] sm:%s37] %v59
    %v62 = vld [vmem:[#allocation1] sm:%s37]
    %63 = vst [vmem:[#allocation0] sm:%s37] %v62
    %v64 = vld [vmem:[#allocation0] sm:$0xff]
    %65 = vperm.xlu0 %4, %v64
    %v66 = vpop.permute.xlu0 %65
    %67 = vst [vmem:[#allocation2] sm:$0xff] %v66
    %s68 = scalar_lea.vmem [#allocation2], 8
    %s69 = scalar_lea.vmem [#allocation0], 8
    %v70 = vld [vmem:[%s69] sm:$0xff]
    %71 = vperm.xlu0 %4, %v70
    %v72 = vpop.permute.xlu0 %71
    %73 = vst [vmem:[%s68] sm:$0xff] %v72
    %s74 = scalar_lea.vmem [#allocation2], 16
    %s75 = scalar_lea.vmem [#allocation0], 16
    %v76 = vld [vmem:[%s75] sm:$0xff]
    %77 = vperm.xlu0 %4, %v76
    %v78 = vpop.permute.xlu0 %77
    %79 = vst [vmem:[%s74] sm:$0xff] %v78
    %s80 = scalar_lea.vmem [#allocation2], 24
    %s81 = scalar_lea.vmem [#allocation0], 24
    %v82 = vld [vmem:[%s81] sm:$0xff]
    %83 = vperm.xlu0 %4, %v82
    %v84 = vpop.permute.xlu0 %83
    %85 = vst [vmem:[%s80] sm:$0xff] %v84
    %s86 = scalar_lea.vmem [#allocation2], 32
    %s87 = scalar_lea.vmem [#allocation0], 32
    %v88 = vld [vmem:[%s87] sm:$0xff]
    %89 = vperm.xlu0 %4, %v88
    %v90 = vpop.permute.xlu0 %89
    %91 = vst [vmem:[%s86] sm:$0xff] %v90
    %s92 = scalar_lea.vmem [#allocation2], 40
    %s93 = scalar_lea.vmem [#allocation0], 40
    %v94 = vld [vmem:[%s93] sm:$0xff]
    %95 = vperm.xlu0 %4, %v94
    %v96 = vpop.permute.xlu0 %95
    %97 = vst [vmem:[%s92] sm:$0xff] %v96
    %s99 = sshllo.u32 0, 1
    %v101 = vld [vmem:[#allocation2] sm:%s99]
    %s102 = sshllo.u32 0, 1
    %103 = vst [vmem:[#allocation3] sm:%s102] %v101
    %s104 = scalar_lea.vmem [#allocation2], 8
    %v105 = vld [vmem:[%s104] sm:%s99]
    %s106 = sshllo.u32 0, 1
    %s107 = scalar_lea.vmem [#allocation3], 1
    %108 = vst [vmem:[%s107] sm:%s106] %v105
    %s109 = scalar_lea.vmem [#allocation2], 16
    %v110 = vld [vmem:[%s109] sm:%s99]
    %s111 = sshllo.u32 0, 1
    %s112 = smul.addr 1, 2
    %s113 = scalar_lea.vmem [#allocation3], %s112
    %114 = vst [vmem:[%s113] sm:%s111] %v110
    %s115 = scalar_lea.vmem [#allocation2], 24
    %v116 = vld [vmem:[%s115] sm:%s99]
    %s117 = sshllo.u32 0, 1
    %s118 = smul.addr 1, 3
    %s119 = scalar_lea.vmem [#allocation3], %s118
    %120 = vst [vmem:[%s119] sm:%s117] %v116
    %s121 = scalar_lea.vmem [#allocation2], 32
    %v122 = vld [vmem:[%s121] sm:%s99]
    %s123 = sshllo.u32 0, 1
    %s124 = smul.addr 1, 4
    %s125 = scalar_lea.vmem [#allocation3], %s124
    %126 = vst [vmem:[%s125] sm:%s123] %v122
    %s127 = scalar_lea.vmem [#allocation2], 40
    %v128 = vld [vmem:[%s127] sm:%s99]
    %s129 = sshllo.u32 0, 1
    %s130 = smul.addr 1, 5
    %s131 = scalar_lea.vmem [#allocation3], %s130
    %132 = vst [vmem:[%s131] sm:%s129] %v128
    // Predicated region
    $region32: #{reverse.2} parent=1 // pred_check
      _
    $region33: #{reverse.2} parent=1 // pred_check_branch
      %134 = sbr.rel (0) target = $region35
    $region34: #{reverse.2} parent=1 // pred_region
      // Predicated region
      $region36: #{reverse.2} parent=34 // pred_check
        _
      $region37: #{reverse.2} parent=34 // pred_check_branch
        %136 = sbr.rel target = $region39
      $region38: #{reverse.2} parent=34 // pred_region
        // Predicated region
        $region51: #{reverse.2} parent=38 // pred_check
          _
        $region52: #{reverse.2} parent=38 // pred_check_branch
          %151 = sbr.rel (0) target = $region54
        $region53: #{reverse.2} parent=38 // pred_region
          loop: start=0, step=1, limit=1
          $region55: #{reverse.2} parent=53 // loop_pre_header
            _
          $region56: #{reverse.2} parent=53 // loop_header
            %s154 = sphi 0, %s158
            %p155 = scmp.ge.s32.totalorder %s154, 1
            %s159 = sphi [#allocation3], [#allocation3]
            %s160 = sphi %s1, %s1
          $region57: #{reverse.2} parent=53 // loop_header_branch
            %157 = sbr.rel (%p155) target = $region61
          $region58: #{reverse.2} parent=53 // loop_body
            %v161 = vld [vmem:[%s159] sm:$0x3f]
            %162 = vst [vmem:[%s160] sm:$0x3f] %v161
          $region59: #{reverse.2} parent=53 // loop_footer
            %s158 = sadd.s32 1, %s154
          $region60: #{reverse.2} parent=53 // loop_footer_branch
            %153 = sbr.rel target = $region56
          $region61: #{reverse.2} parent=53 // loop_exit
            _
        $region54: #{reverse.2} parent=38 // pred_fallthru
          _
      $region39: #{reverse.2} parent=34 // pred_fallthru
        _
      // Predicated region
      $region40: #{reverse.2} parent=34 // pred_check
        _
      $region41: #{reverse.2} parent=34 // pred_check_branch
        %138 = sbr.rel (0) target = $region43
      $region42: #{reverse.2} parent=34 // pred_region
        loop: start=0, step=1, limit=1
        $region44: #{reverse.2} parent=42 // loop_pre_header
          _
        $region45: #{reverse.2} parent=42 // loop_header
          %s141 = sphi 0, %s145
          %p142 = scmp.ge.s32.totalorder %s141, 1
          %s146 = sphi [#allocation3], [#allocation3]
          %s147 = sphi %s1, %s1
        $region46: #{reverse.2} parent=42 // loop_header_branch
          %144 = sbr.rel (%p142) target = $region50
        $region47: #{reverse.2} parent=42 // loop_body
          %v148 = vld [vmem:[%s146] sm:$0x3f]
          %149 = vst [vmem:[%s147] sm:$0x3f] %v148
        $region48: #{reverse.2} parent=42 // loop_footer
          %s145 = sadd.s32 1, %s141
        $region49: #{reverse.2} parent=42 // loop_footer_branch
          %140 = sbr.rel target = $region45
        $region50: #{reverse.2} parent=42 // loop_exit
          _
      $region43: #{reverse.2} parent=34 // pred_fallthru
        _
    $region35: #{reverse.2} parent=1 // pred_fallthru
      _
    %163 = vnop

// kernel: reverse.1
$region0: #{reverse.1}
  %s0 = inlined_call_operand.vmem [shape: s32[2,3,1,16], index: 0, kind: input, shape index: {}]
  %s1 = inlined_call_operand.vmem [shape: s32[2,3,1,16], index: 1, kind: output, shape index: {}]
  %v2 = vlaneseq
  %v3 = vsub.s32 15, %v2
  %4 = vset.pattern.permute.xlu0 %v3
  $region1: #{reverse.1} parent=0
    #allocation0 [shape = 'u8[49152]{0}', space=vmem, size = 0xc000, scoped, tag = 'operand span for operand 0']
    #allocation1 [shape = 'u8[6144]{0}', space=vmem, size = 0x1800, scoped, tag = 'packed  for operand 0']
    #allocation2 [shape = 'u8[24576]{0}', space=vmem, size = 0x6000, scoped, tag = 'operand span for operand 1']
    #allocation3 [shape = 'u8[3072]{0}', space=vmem, size = 0xc00, scoped, tag = 'packed  for operand 1']
    %s5 = scalar_lea.vmem [#allocation1], 1
    // Predicated region
    $region2: #{reverse.1} parent=1 // pred_check
      _
    $region3: #{reverse.1} parent=1 // pred_check_branch
      %7 = sbr.rel (0) target = $region5
    $region4: #{reverse.1} parent=1 // pred_region
      // Predicated region
      $region6: #{reverse.1} parent=4 // pred_check
        _
      $region7: #{reverse.1} parent=4 // pred_check_branch
        %9 = sbr.rel target = $region9
      $region8: #{reverse.1} parent=4 // pred_region
        // Predicated region
        $region21: #{reverse.1} parent=8 // pred_check
          _
        $region22: #{reverse.1} parent=8 // pred_check_branch
          %34 = sbr.rel (0) target = $region24
        $region23: #{reverse.1} parent=8 // pred_region
          loop: start=0, step=1, limit=1
          $region25: #{reverse.1} parent=23 // loop_pre_header
            _
          $region26: #{reverse.1} parent=23 // loop_header
            %s37 = sphi 0, %s41
            %p38 = scmp.ge.s32.totalorder %s37, 1
            %s42 = sphi %s0, %s0
            %s43 = sphi %s5, %s5
          $region27: #{reverse.1} parent=23 // loop_header_branch
            %40 = sbr.rel (%p38) target = $region31
          $region28: #{reverse.1} parent=23 // loop_body
            %v44 = vld [vmem:[%s42] sm:$0x1]
            %45 = vst [vmem:[%s43] sm:$0x1] %v44
            %v46 = vld [vmem:[%s42 + $0x1] sm:$0x1]
            %47 = vst [vmem:[%s43 + $0x2] sm:$0x1] %v46
            %v48 = vld [vmem:[%s42 + $0x2] sm:$0x1]
            %49 = vst [vmem:[%s43 + $0x4] sm:$0x1] %v48
            %v50 = vld [vmem:[%s42 + $0x3] sm:$0x1]
            %51 = vst [vmem:[%s43 + $0x6] sm:$0x1] %v50
            %v52 = vld [vmem:[%s42 + $0x4] sm:$0x1]
            %53 = vst [vmem:[%s43 + $0x8] sm:$0x1] %v52
            %v54 = vld [vmem:[%s42 + $0x5] sm:$0x1]
            %55 = vst [vmem:[%s43 + $0xa] sm:$0x1] %v54
          $region29: #{reverse.1} parent=23 // loop_footer
            %s41 = sadd.s32 1, %s37
          $region30: #{reverse.1} parent=23 // loop_footer_branch
            %36 = sbr.rel target = $region26
          $region31: #{reverse.1} parent=23 // loop_exit
            _
        $region24: #{reverse.1} parent=8 // pred_fallthru
          _
      $region9: #{reverse.1} parent=4 // pred_fallthru
        _
      // Predicated region
      $region10: #{reverse.1} parent=4 // pred_check
        _
      $region11: #{reverse.1} parent=4 // pred_check_branch
        %11 = sbr.rel (0) target = $region13
      $region12: #{reverse.1} parent=4 // pred_region
        loop: start=0, step=1, limit=1
        $region14: #{reverse.1} parent=12 // loop_pre_header
          _
        $region15: #{reverse.1} parent=12 // loop_header
          %s14 = sphi 0, %s18
          %p15 = scmp.ge.s32.totalorder %s14, 1
          %s19 = sphi %s0, %s0
          %s20 = sphi %s5, %s5
        $region16: #{reverse.1} parent=12 // loop_header_branch
          %17 = sbr.rel (%p15) target = $region20
        $region17: #{reverse.1} parent=12 // loop_body
          %v21 = vld [vmem:[%s19] sm:$0x1]
          %22 = vst [vmem:[%s20] sm:$0x1] %v21
          %v23 = vld [vmem:[%s19 + $0x1] sm:$0x1]
          %24 = vst [vmem:[%s20 + $0x2] sm:$0x1] %v23
          %v25 = vld [vmem:[%s19 + $0x2] sm:$0x1]
          %26 = vst [vmem:[%s20 + $0x4] sm:$0x1] %v25
          %v27 = vld [vmem:[%s19 + $0x3] sm:$0x1]
          %28 = vst [vmem:[%s20 + $0x6] sm:$0x1] %v27
          %v29 = vld [vmem:[%s19 + $0x4] sm:$0x1]
          %30 = vst [vmem:[%s20 + $0x8] sm:$0x1] %v29
          %v31 = vld [vmem:[%s19 + $0x5] sm:$0x1]
          %32 = vst [vmem:[%s20 + $0xa] sm:$0x1] %v31
        $region18: #{reverse.1} parent=12 // loop_footer
          %s18 = sadd.s32 1, %s14
        $region19: #{reverse.1} parent=12 // loop_footer_branch
          %13 = sbr.rel target = $region15
        $region20: #{reverse.1} parent=12 // loop_exit
          _
      $region13: #{reverse.1} parent=4 // pred_fallthru
        _
    $region5: #{reverse.1} parent=1 // pred_fallthru
      _
    %56 = vnop
    %s58 = sshllo.u32 0, 1
    %s59 = smul.addr 1, 11
    %s60 = scalar_lea.vmem [#allocation1], %s59
    %v61 = vld [vmem:[%s60] sm:%s58]
    %s62 = scalar_lea.vmem [#allocation0], 88
    %63 = vst [vmem:[%s62] sm:%s58] %v61
    %s64 = smul.addr 1, 10
    %s65 = scalar_lea.vmem [#allocation1], %s64
    %v66 = vld [vmem:[%s65] sm:%s58]
    %s67 = scalar_lea.vmem [#allocation0], 80
    %68 = vst [vmem:[%s67] sm:%s58] %v66
    %s69 = smul.addr 1, 9
    %s70 = scalar_lea.vmem [#allocation1], %s69
    %v71 = vld [vmem:[%s70] sm:%s58]
    %s72 = scalar_lea.vmem [#allocation0], 72
    %73 = vst [vmem:[%s72] sm:%s58] %v71
    %s74 = smul.addr 1, 8
    %s75 = scalar_lea.vmem [#allocation1], %s74
    %v76 = vld [vmem:[%s75] sm:%s58]
    %s77 = scalar_lea.vmem [#allocation0], 64
    %78 = vst [vmem:[%s77] sm:%s58] %v76
    %s79 = smul.addr 1, 7
    %s80 = scalar_lea.vmem [#allocation1], %s79
    %v81 = vld [vmem:[%s80] sm:%s58]
    %s82 = scalar_lea.vmem [#allocation0], 56
    %83 = vst [vmem:[%s82] sm:%s58] %v81
    %s84 = smul.addr 1, 6
    %s85 = scalar_lea.vmem [#allocation1], %s84
    %v86 = vld [vmem:[%s85] sm:%s58]
    %s87 = scalar_lea.vmem [#allocation0], 48
    %88 = vst [vmem:[%s87] sm:%s58] %v86
    %s89 = smul.addr 1, 5
    %s90 = scalar_lea.vmem [#allocation1], %s89
    %v91 = vld [vmem:[%s90] sm:%s58]
    %s92 = scalar_lea.vmem [#allocation0], 40
    %93 = vst [vmem:[%s92] sm:%s58] %v91
    %s94 = smul.addr 1, 4
    %s95 = scalar_lea.vmem [#allocation1], %s94
    %v96 = vld [vmem:[%s95] sm:%s58]
    %s97 = scalar_lea.vmem [#allocation0], 32
    %98 = vst [vmem:[%s97] sm:%s58] %v96
    %s99 = smul.addr 1, 3
    %s100 = scalar_lea.vmem [#allocation1], %s99
    %v101 = vld [vmem:[%s100] sm:%s58]
    %s102 = scalar_lea.vmem [#allocation0], 24
    %103 = vst [vmem:[%s102] sm:%s58] %v101
    %s104 = smul.addr 1, 2
    %s105 = scalar_lea.vmem [#allocation1], %s104
    %v106 = vld [vmem:[%s105] sm:%s58]
    %s107 = scalar_lea.vmem [#allocation0], 16
    %108 = vst [vmem:[%s107] sm:%s58] %v106
    %s109 = scalar_lea.vmem [#allocation1], 1
    %v110 = vld [vmem:[%s109] sm:%s58]
    %s111 = scalar_lea.vmem [#allocation0], 8
    %112 = vst [vmem:[%s111] sm:%s58] %v110
    %v113 = vld [vmem:[#allocation1] sm:%s58]
    %114 = vst [vmem:[#allocation0] sm:%s58] %v113
    %s115 = scalar_lea.vmem [#allocation0], 7
    %v116 = vld [vmem:[%s115] ss:$-1 sm:$0xff]
    %v117 = vrot.slane %v116, 7
    %118 = vperm.xlu0 %4, %v117
    %v119 = vpop.permute.xlu0 %118
    %120 = vst [vmem:[#allocation2] sm:$0xff] %v119
    %s121 = scalar_lea.vmem [#allocation0], 8
    %s122 = scalar_lea.vmem %s121, 7 [#allocation0]
    %v123 = vld [vmem:[%s122] ss:$-1 sm:$0xff]
    %v124 = vrot.slane %v123, 7
    %125 = vperm.xlu0 %4, %v124
    %v126 = vpop.permute.xlu0 %125
    %v127 = vlaneseq
    %v128 = vshrl.u32 %v127, 7
    %vm129 = vcmp.lt.s32.totalorder %v128, 1
    %130 = vst.msk [vmem:[#allocation2] sm:$0xff] %vm129, %v126
    %s131 = scalar_lea.vmem [#allocation2], 8
    %s132 = scalar_lea.vmem [#allocation0], 16
    %s133 = scalar_lea.vmem %s132, 7 [#allocation0]
    %v134 = vld [vmem:[%s133] ss:$-1 sm:$0xff]
    %v135 = vrot.slane %v134, 7
    %136 = vperm.xlu0 %4, %v135
    %v137 = vpop.permute.xlu0 %136
    %138 = vst [vmem:[%s131] sm:$0xff] %v137
    %s139 = scalar_lea.vmem %s132, 8 [#allocation0]
    %s140 = scalar_lea.vmem %s139, 7 [#allocation0]
    %v141 = vld [vmem:[%s140] ss:$-1 sm:$0xff]
    %v142 = vrot.slane %v141, 7
    %143 = vperm.xlu0 %4, %v142
    %v144 = vpop.permute.xlu0 %143
    %v145 = vlaneseq
    %v146 = vshrl.u32 %v145, 7
    %vm147 = vcmp.lt.s32.totalorder %v146, 1
    %148 = vst.msk [vmem:[%s131] sm:$0xff] %vm147, %v144
    %s149 = scalar_lea.vmem [#allocation2], 16
    %s150 = scalar_lea.vmem [#allocation0], 32
    %s151 = scalar_lea.vmem %s150, 7 [#allocation0]
    %v152 = vld [vmem:[%s151] ss:$-1 sm:$0xff]
    %v153 = vrot.slane %v152, 7
    %154 = vperm.xlu0 %4, %v153
    %v155 = vpop.permute.xlu0 %154
    %156 = vst [vmem:[%s149] sm:$0xff] %v155
    %s157 = scalar_lea.vmem %s150, 8 [#allocation0]
    %s158 = scalar_lea.vmem %s157, 7 [#allocation0]
    %v159 = vld [vmem:[%s158] ss:$-1 sm:$0xff]
    %v160 = vrot.slane %v159, 7
    %161 = vperm.xlu0 %4, %v160
    %v162 = vpop.permute.xlu0 %161
    %v163 = vlaneseq
    %v164 = vshrl.u32 %v163, 7
    %vm165 = vcmp.lt.s32.totalorder %v164, 1
    %166 = vst.msk [vmem:[%s149] sm:$0xff] %vm165, %v162
    %s167 = scalar_lea.vmem [#allocation2], 24
    %s168 = scalar_lea.vmem [#allocation0], 48
    %s169 = scalar_lea.vmem %s168, 7 [#allocation0]
    %v170 = vld [vmem:[%s169] ss:$-1 sm:$0xff]
    %v171 = vrot.slane %v170, 7
    %172 = vperm.xlu0 %4, %v171
    %v173 = vpop.permute.xlu0 %172
    %174 = vst [vmem:[%s167] sm:$0xff] %v173
    %s175 = scalar_lea.vmem %s168, 8 [#allocation0]
    %s176 = scalar_lea.vmem %s175, 7 [#allocation0]
    %v177 = vld [vmem:[%s176] ss:$-1 sm:$0xff]
    %v178 = vrot.slane %v177, 7
    %179 = vperm.xlu0 %4, %v178
    %v180 = vpop.permute.xlu0 %179
    %v181 = vlaneseq
    %v182 = vshrl.u32 %v181, 7
    %vm183 = vcmp.lt.s32.totalorder %v182, 1
    %184 = vst.msk [vmem:[%s167] sm:$0xff] %vm183, %v180
    %s185 = scalar_lea.vmem [#allocation2], 32
    %s186 = scalar_lea.vmem [#allocation0], 64
    %s187 = scalar_lea.vmem %s186, 7 [#allocation0]
    %v188 = vld [vmem:[%s187] ss:$-1 sm:$0xff]
    %v189 = vrot.slane %v188, 7
    %190 = vperm.xlu0 %4, %v189
    %v191 = vpop.permute.xlu0 %190
    %192 = vst [vmem:[%s185] sm:$0xff] %v191
    %s193 = scalar_lea.vmem %s186, 8 [#allocation0]
    %s194 = scalar_lea.vmem %s193, 7 [#allocation0]
    %v195 = vld [vmem:[%s194] ss:$-1 sm:$0xff]
    %v196 = vrot.slane %v195, 7
    %197 = vperm.xlu0 %4, %v196
    %v198 = vpop.permute.xlu0 %197
    %v199 = vlaneseq
    %v200 = vshrl.u32 %v199, 7
    %vm201 = vcmp.lt.s32.totalorder %v200, 1
    %202 = vst.msk [vmem:[%s185] sm:$0xff] %vm201, %v198
    %s203 = scalar_lea.vmem [#allocation2], 40
    %s204 = scalar_lea.vmem [#allocation0], 80
    %s205 = scalar_lea.vmem %s204, 7 [#allocation0]
    %v206 = vld [vmem:[%s205] ss:$-1 sm:$0xff]
    %v207 = vrot.slane %v206, 7
    %208 = vperm.xlu0 %4, %v207
    %v209 = vpop.permute.xlu0 %208
    %210 = vst [vmem:[%s203] sm:$0xff] %v209
    %s211 = scalar_lea.vmem %s204, 8 [#allocation0]
    %s212 = scalar_lea.vmem %s211, 7 [#allocation0]
    %v213 = vld [vmem:[%s212] ss:$-1 sm:$0xff]
    %v214 = vrot.slane %v213, 7
    %215 = vperm.xlu0 %4, %v214
    %v216 = vpop.permute.xlu0 %215
    %v217 = vlaneseq
    %v218 = vshrl.u32 %v217, 7
    %vm219 = vcmp.lt.s32.totalorder %v218, 1
    %220 = vst.msk [vmem:[%s203] sm:$0xff] %vm219, %v216
    %s222 = sshllo.u32 0, 1
    %v224 = vld [vmem:[#allocation2] sm:%s222]
    %s225 = sshllo.u32 0, 1
    %226 = vst [vmem:[#allocation3] sm:%s225] %v224
    %s227 = scalar_lea.vmem [#allocation2], 8
    %v228 = vld [vmem:[%s227] sm:%s222]
    %s229 = sshllo.u32 0, 1
    %s230 = scalar_lea.vmem [#allocation3], 1
    %231 = vst [vmem:[%s230] sm:%s229] %v228
    %s232 = scalar_lea.vmem [#allocation2], 16
    %v233 = vld [vmem:[%s232] sm:%s222]
    %s234 = sshllo.u32 0, 1
    %s235 = smul.addr 1, 2
    %s236 = scalar_lea.vmem [#allocation3], %s235
    %237 = vst [vmem:[%s236] sm:%s234] %v233
    %s238 = scalar_lea.vmem [#allocation2], 24
    %v239 = vld [vmem:[%s238] sm:%s222]
    %s240 = sshllo.u32 0, 1
    %s241 = smul.addr 1, 3
    %s242 = scalar_lea.vmem [#allocation3], %s241
    %243 = vst [vmem:[%s242] sm:%s240] %v239
    %s244 = scalar_lea.vmem [#allocation2], 32
    %v245 = vld [vmem:[%s244] sm:%s222]
    %s246 = sshllo.u32 0, 1
    %s247 = smul.addr 1, 4
    %s248 = scalar_lea.vmem [#allocation3], %s247
    %249 = vst [vmem:[%s248] sm:%s246] %v245
    %s250 = scalar_lea.vmem [#allocation2], 40
    %v251 = vld [vmem:[%s250] sm:%s222]
    %s252 = sshllo.u32 0, 1
    %s253 = smul.addr 1, 5
    %s254 = scalar_lea.vmem [#allocation3], %s253
    %255 = vst [vmem:[%s254] sm:%s252] %v251
    // Predicated region
    $region32: #{reverse.1} parent=1 // pred_check
      _
    $region33: #{reverse.1} parent=1 // pred_check_branch
      %257 = sbr.rel (0) target = $region35
    $region34: #{reverse.1} parent=1 // pred_region
      // Predicated region
      $region36: #{reverse.1} parent=34 // pred_check
        _
      $region37: #{reverse.1} parent=34 // pred_check_branch
        %259 = sbr.rel target = $region39
      $region38: #{reverse.1} parent=34 // pred_region
        // Predicated region
        $region51: #{reverse.1} parent=38 // pred_check
          _
        $region52: #{reverse.1} parent=38 // pred_check_branch
          %274 = sbr.rel (0) target = $region54
        $region53: #{reverse.1} parent=38 // pred_region
          loop: start=0, step=1, limit=1
          $region55: #{reverse.1} parent=53 // loop_pre_header
            _
          $region56: #{reverse.1} parent=53 // loop_header
            %s277 = sphi 0, %s281
            %p278 = scmp.ge.s32.totalorder %s277, 1
            %s282 = sphi [#allocation3], [#allocation3]
            %s283 = sphi %s1, %s1
          $region57: #{reverse.1} parent=53 // loop_header_branch
            %280 = sbr.rel (%p278) target = $region61
          $region58: #{reverse.1} parent=53 // loop_body
            %v284 = vld [vmem:[%s282] sm:$0x3f]
            %285 = vst [vmem:[%s283] sm:$0x3f] %v284
          $region59: #{reverse.1} parent=53 // loop_footer
            %s281 = sadd.s32 1, %s277
          $region60: #{reverse.1} parent=53 // loop_footer_branch
            %276 = sbr.rel target = $region56
          $region61: #{reverse.1} parent=53 // loop_exit
            _
        $region54: #{reverse.1} parent=38 // pred_fallthru
          _
      $region39: #{reverse.1} parent=34 // pred_fallthru
        _
      // Predicated region
      $region40: #{reverse.1} parent=34 // pred_check
        _
      $region41: #{reverse.1} parent=34 // pred_check_branch
        %261 = sbr.rel (0) target = $region43
      $region42: #{reverse.1} parent=34 // pred_region
        loop: start=0, step=1, limit=1
        $region44: #{reverse.1} parent=42 // loop_pre_header
          _
        $region45: #{reverse.1} parent=42 // loop_header
          %s264 = sphi 0, %s268
          %p265 = scmp.ge.s32.totalorder %s264, 1
          %s269 = sphi [#allocation3], [#allocation3]
          %s270 = sphi %s1, %s1
        $region46: #{reverse.1} parent=42 // loop_header_branch
          %267 = sbr.rel (%p265) target = $region50
        $region47: #{reverse.1} parent=42 // loop_body
          %v271 = vld [vmem:[%s269] sm:$0x3f]
          %272 = vst [vmem:[%s270] sm:$0x3f] %v271
        $region48: #{reverse.1} parent=42 // loop_footer
          %s268 = sadd.s32 1, %s264
        $region49: #{reverse.1} parent=42 // loop_footer_branch
          %263 = sbr.rel target = $region45
        $region50: #{reverse.1} parent=42 // loop_exit
          _
      $region43: #{reverse.1} parent=34 // pred_fallthru
        _
    $region35: #{reverse.1} parent=1 // pred_fallthru
      _
    %286 = vnop

// kernel: hdbvlut_forward.1
$region0: #{hdbvlut_forward.1}
  #allocation0 [shape = 'u32[]', space=smem, size = 0x4, offset = 0x4, fixed_abs, tag = 'smem constant byte address 0x4 - core index']
  #allocation1 [shape = 'u32[144,128]{1,0:T(1,128)}', space=vmem, size = 0x12000, scoped, tag = 'internal scratch']
  %s0 = inlined_call_operand.vmem [shape: s32[16,1,2048], index: 0, kind: input, shape index: {}]
  %s1 = inlined_call_operand.vmem [shape: bf16[4,4,512], index: 1, kind: input, shape index: {}]
  %s2 = inlined_call_operand.vmem [shape: f32[16,4,2048], index: 2, kind: output, shape index: {}]
  %s3 = sld [smem:[#allocation0]]
  $region41: #{hdbvlut_forward.1} parent=0
    _
  %s5 = ssub.s32 1, %s3
  %s6 = scalar_select 0, %s5, %s3
  loop: start=0, step=1, limit=34
  $region2: #{hdbvlut_forward.1} parent=0 // loop_pre_header
    _
  $region3: #{hdbvlut_forward.1} parent=0 // loop_header
    %s8 = sphi 0, %s12
    %p9 = scmp.ge.s32.totalorder %s8, 34
    %s15 = sphi 0, %s27
    %s16 = sphi 0, %s23
    %s17 = sphi 0, %s15
    %s18 = sphi 0, %s16
    %s19 = sphi 0, %s17
    %s20 = sphi 0, %s18
    %s32 = sphi 0, %s34
    %s35 = sphi 0, %s32
    %s36 = sphi 0, %s35
    %s52 = sphi 0, %s36
    %s56 = sphi 0, %s56
    %s58 = sphi 0, %s56
    %s59 = sphi 0, %s58
    %s73 = sphi 0, %s59
    %s81 = sphi 0, %s83
    %s84 = sphi 0, %s81
    %s85 = sphi 0, %s84
    %s101 = sphi 0, %s85
  $region4: #{hdbvlut_forward.1} parent=0 // loop_header_branch
    %11 = sbr.rel (%p9) target = $region8
  $region5: #{hdbvlut_forward.1} parent=0 // loop_body
    %s13 = ssub.s32 %s8, 1
    %s14 = ssub.s32 %s8, 2
    %s21 = sadd.s32 1, %s16
    %p22 = scmp.ge.s32.totalorder %s21, 2
    %s23 = scalar_select %p22, 0, %s21
    %s24 = sadd.s32 1, %s15
    %s25 = scalar_select %p22, %s24, %s15
    %p26 = scmp.ge.s32.totalorder %s25, 16
    %s27 = scalar_select %p26, 0, %s25
    %s28 = ssub.s32 %s15, %s27
    %s29 = ssub.s32 %s16, %s23
    %s30 = sor.u32 %s28, %s29
    %p31 = scmp.eq.s32.totalorder %s30, 0
    %s33 = sadd.s32 %s32, 1
    %s34 = scalar_select %p31, %s32, %s33
    %p37 = pneg %p31
    %p38 = scmp.eq.s32.totalorder %s8, 31
    %p39 = por %p37, %p38
    %p40 = scmp.ne.s32.totalorder %s32, %s35
    %p41 = scmp.eq.s32.totalorder %s8, 0
    %p42 = por %p40, %p41
    %p43 = scmp.ne.s32.totalorder %s32, %s35
    %p44 = scmp.eq.s32.totalorder %s13, 31
    %p45 = por %p43, %p44
    %p46 = scmp.ne.s32.totalorder %s35, %s36
    %p47 = scmp.eq.s32.totalorder %s13, 0
    %p48 = por %p46, %p47
    %p49 = scmp.ne.s32.totalorder %s35, %s36
    %p50 = scmp.eq.s32.totalorder %s14, 31
    %p51 = por %p49, %p50
    %p53 = scmp.ne.s32.totalorder %s36, %s52
    %p54 = scmp.eq.s32.totalorder %s14, 0
    %p55 = por %p53, %p54
    %s57 = sadd.s32 %s56, 1
    %p60 = scmp.eq.s32.totalorder %s8, 31
    %p61 = scmp.ne.s32.totalorder %s56, %s58
    %p62 = scmp.eq.s32.totalorder %s8, 0
    %p63 = por %p61, %p62
    %p64 = scmp.ne.s32.totalorder %s56, %s58
    %p65 = scmp.eq.s32.totalorder %s13, 31
    %p66 = por %p64, %p65
    %p67 = scmp.ne.s32.totalorder %s58, %s59
    %p68 = scmp.eq.s32.totalorder %s13, 0
    %p69 = por %p67, %p68
    %p70 = scmp.ne.s32.totalorder %s58, %s59
    %p71 = scmp.eq.s32.totalorder %s14, 31
    %p72 = por %p70, %p71
    %p74 = scmp.ne.s32.totalorder %s59, %s73
    %p75 = scmp.eq.s32.totalorder %s14, 0
    %p76 = por %p74, %p75
    %s77 = ssub.s32 %s15, %s27
    %s78 = ssub.s32 %s16, %s23
    %s79 = sor.u32 %s77, %s78
    %p80 = scmp.eq.s32.totalorder %s79, 0
    %s82 = sadd.s32 %s81, 1
    %s83 = scalar_select %p80, %s81, %s82
    %p86 = pneg %p80
    %p87 = scmp.eq.s32.totalorder %s8, 31
    %p88 = por %p86, %p87
    %p89 = scmp.ne.s32.totalorder %s81, %s84
    %p90 = scmp.eq.s32.totalorder %s8, 0
    %p91 = por %p89, %p90
    %p92 = scmp.ne.s32.totalorder %s81, %s84
    %p93 = scmp.eq.s32.totalorder %s13, 31
    %p94 = por %p92, %p93
    %p95 = scmp.ne.s32.totalorder %s84, %s85
    %p96 = scmp.eq.s32.totalorder %s13, 0
    %p97 = por %p95, %p96
    %p98 = scmp.ne.s32.totalorder %s84, %s85
    %p99 = scmp.eq.s32.totalorder %s14, 31
    %p100 = por %p98, %p99
    %p102 = scmp.ne.s32.totalorder %s85, %s101
    %p103 = scmp.eq.s32.totalorder %s14, 0
    %p104 = por %p102, %p103
    %p105 = scmp.le.s32.totalorder 1, %s8
    %p106 = scmp.lt.s32.totalorder %s8, 33
    %p107 = pnand %p105, %p106
    %p108 = pneg %p107
    // Predicated region
    $region9: #{hdbvlut_forward.1} parent=5 // pred_check
      _
    $region10: #{hdbvlut_forward.1} parent=5 // pred_check_branch
      %110 = sbr.rel (%p107) target = $region12
    $region11: #{hdbvlut_forward.1} parent=5 // pred_region
      %s111 = ssub.s32 %s8, 1
      // Predicated region
      $region13: #{hdbvlut_forward.1} parent=11 // pred_check
        %p112 = pneg %p69
      $region14: #{hdbvlut_forward.1} parent=11 // pred_check_branch
        %114 = sbr.rel (%p112) target = $region16
      $region15: #{hdbvlut_forward.1} parent=11 // pred_region
        _
      $region16: #{hdbvlut_forward.1} parent=11 // pred_fallthru
        _
    $region12: #{hdbvlut_forward.1} parent=5 // pred_fallthru
      _
    %p115 = scmp.lt.s32.totalorder %s8, 32
    // Predicated region
    $region17: #{hdbvlut_forward.1} parent=5 // pred_check
      %p116 = pneg %p115
    $region18: #{hdbvlut_forward.1} parent=5 // pred_check_branch
      %118 = sbr.rel (%p116) target = $region20
    $region19: #{hdbvlut_forward.1} parent=5 // pred_region
      // Predicated region
      $region21: #{hdbvlut_forward.1} parent=19 // pred_check
        %p119 = pneg %p42
      $region22: #{hdbvlut_forward.1} parent=19 // pred_check_branch
        %121 = sbr.rel (%p119) target = $region24
      $region23: #{hdbvlut_forward.1} parent=19 // pred_region
        %s122 = smul.u32 8, %s16
        %p123 = scmp.lt.s32.totalorder %s15, 15
        %s124 = scalar_select %p123, %s15, 15
        %p125 = scmp.lt.s32.totalorder %s122, 15
        %s126 = scalar_select %p125, %s122, 15
        %s127 = smul.addr %s124, 16
        %s128 = sadd.s32 %s126, %s127
        %s129 = scalar_lea.vmem %s0, %s128
        %s130 = smul.u32 8, %s16
      $region24: #{hdbvlut_forward.1} parent=19 // pred_fallthru
        _
    $region20: #{hdbvlut_forward.1} parent=5 // pred_fallthru
      _
    %p131 = scmp.le.s32.totalorder 1, %s8
    %p132 = scmp.lt.s32.totalorder %s8, 33
    %p133 = pnand %p131, %p132
    %p134 = pneg %p133
    // Predicated region
    $region25: #{hdbvlut_forward.1} parent=5 // pred_check
      _
    $region26: #{hdbvlut_forward.1} parent=5 // pred_check_branch
      %136 = sbr.rel (%p133) target = $region28
    $region27: #{hdbvlut_forward.1} parent=5 // pred_region
      %s137 = ssub.s32 %s8, 1
      %s138 = smul.u32 8, %s18
      %p139 = scmp.lt.s32.totalorder %s17, 15
      %s140 = scalar_select %p139, %s17, 15
      %p141 = scmp.lt.s32.totalorder %s138, 15
      %s142 = scalar_select %p141, %s138, 15
      %s143 = smul.addr %s140, 16
      %s144 = sadd.s32 %s142, %s143
      %s145 = scalar_lea.vmem %s0, %s144
      %p146 = pneg %p48
      %p147 = pneg %p45
      %p148 = pneg %p69
      %p149 = pneg %p66
      %p150 = pneg %p97
      %p151 = pneg %p94
      %s152 = smul.u32 8, %s18
      %p153 = scmp.lt.s32.totalorder %s17, 15
      %s154 = scalar_select %p153, %s17, 15
      %p155 = scmp.lt.s32.totalorder %s152, 15
      %s156 = scalar_select %p155, %s152, 15
      %s157 = smul.addr %s154, 16
      %s158 = sadd.s32 %s156, %s157
      %s159 = smul.addr %s158, 4
      %s160 = scalar_lea.vmem %s2, %s159
      %s161 = smul.u32 8, %s18
      %p162 = scmp.lt.s32.totalorder %s17, 15
      %s163 = scalar_select %p162, %s17, 15
      %p164 = scmp.lt.s32.totalorder %s161, 15
      %s165 = scalar_select %p164, %s161, 15
      %s166 = smul.addr %s163, 16
      %s167 = sadd.s32 %s165, %s166
      %s168 = scalar_lea.vmem %s0, %s167
      %s169 = smul.u32 8, %s18
      %s170 = smul.u32 8, %s18
      %p171 = scmp.lt.s32.totalorder %s17, 15
      %s172 = scalar_select %p171, %s17, 15
      %p173 = scmp.lt.s32.totalorder %s170, 15
      %s174 = scalar_select %p173, %s170, 15
      %s175 = smul.addr %s172, 16
      %s176 = sadd.s32 %s174, %s175
      %s177 = smul.addr %s176, 4
      %s178 = scalar_lea.vmem %s2, %s177
      %s179 = smul.u32 8, %s18
      %p180 = scmp.lt.s32.totalorder %s17, 0
      %s181 = ssub.s32 0, %s17
      %s182 = scalar_select %p180, %s181, %s17
      %s183 = sand.u32 %s182, 3
      %s184 = ssub.s32 0, %s183
      %s185 = scalar_select %p180, %s184, %s183
      %p186 = scmp.ne.s32.totalorder %s185, 0
      %p187 = scmp.lt.s32.totalorder %s185, 0
      %p188 = pnand %p187, %p186
      %p189 = pneg %p188
      %s190 = sadd.s32 %s185, 4
      %s191 = scalar_select %p189, %s190, %s185
      %s192 = smul.u32 %s191, 4
      %s193 = smul.addr %s192, 2
      %s194 = scalar_lea.vmem %s1, %s193
      %v195 = vld [vmem:[%s194] sm:$0xff]
      %v196 = vld [vmem:[%s168] sm:$0xff]
      %v197 = vlaneseq
      %v198 = vshrl.u32 %v197, 7
      %v199 = vadd.s32 %v198, 8
      %v200 = vadd.s32 %v198, 16
      %v201 = vadd.s32 %v198, 24
      %v202 = vadd.s32 %v198, 32
      %v203 = vadd.s32 %v198, 40
      %v204 = vadd.s32 %v198, 48
      %v205 = vadd.s32 %v198, 56
      %v206 = vadd.s32 %v198, 64
      %v207 = vadd.s32 %v198, 72
      %v208 = vadd.s32 %v198, 80
      %v209 = vadd.s32 %v198, 88
      %v210 = vadd.s32 %v198, 96
      %v211 = vadd.s32 %v198, 104
      %v212 = vadd.s32 %v198, 112
      %v213 = vadd.s32 %v198, 120
      %v214 = vadd.s32 %v198, 128
      %v215 = vadd.s32 %v198, 136
      %v216 = vadd.s32 %v198, 144
      %v217 = vadd.s32 %v198, 152
      %v218 = vadd.s32 %v198, 160
      %v219 = vadd.s32 %v198, 168
      %v220 = vadd.s32 %v198, 176
      %v221 = vadd.s32 %v198, 184
      %v222 = vadd.s32 %v198, 192
      %v223 = vadd.s32 %v198, 200
      %v224 = vadd.s32 %v198, 208
      %v225 = vadd.s32 %v198, 216
      %v226 = vadd.s32 %v198, 224
      %v227 = vadd.s32 %v198, 232
      %v228 = vadd.s32 %v198, 240
      %v229 = vadd.s32 %v198, 248
      %v230 = vadd.s32 %v198, 256
      %v231 = vadd.s32 %v198, 264
      %v232 = vadd.s32 %v198, 272
      %v233 = vadd.s32 %v198, 280
      %v234 = vadd.s32 %v198, 288
      %v235 = vadd.s32 %v198, 296
      %v236 = vadd.s32 %v198, 304
      %v237 = vadd.s32 %v198, 312
      %v238 = vadd.s32 %v198, 320
      %v239 = vadd.s32 %v198, 328
      %v240 = vadd.s32 %v198, 336
      %v241 = vadd.s32 %v198, 344
      %v242 = vadd.s32 %v198, 352
      %v243 = vadd.s32 %v198, 360
      %v244 = vadd.s32 %v198, 368
      %v245 = vadd.s32 %v198, 376
      %v246 = vadd.s32 %v198, 384
      %v247 = vadd.s32 %v198, 392
      %v248 = vadd.s32 %v198, 400
      %v249 = vadd.s32 %v198, 408
      %v250 = vadd.s32 %v198, 416
      %v251 = vadd.s32 %v198, 424
      %v252 = vadd.s32 %v198, 432
      %v253 = vadd.s32 %v198, 440
      %v254 = vadd.s32 %v198, 448
      %v255 = vadd.s32 %v198, 456
      %v256 = vadd.s32 %v198, 464
      %v257 = vadd.s32 %v198, 472
      %v258 = vadd.s32 %v198, 480
      %v259 = vadd.s32 %v198, 488
      %v260 = vadd.s32 %v198, 496
      %v261 = vadd.s32 %v198, 504
      %v262 = vlaneseq
      %v263 = vshrl.u32 %v262, 7
      %v264 = vsub.s32 0, %v263
      %v265 = vrot.slane %v196, %v264
      %v266 = vlaneseq
      %v267 = vshrl.u32 %v266, 7
      %v268 = vsub.s32 1, %v267
      %v269 = vrot.slane %v196, %v268
      %v270 = vlaneseq
      %v271 = vshrl.u32 %v270, 7
      %v272 = vsub.s32 2, %v271
      %v273 = vrot.slane %v196, %v272
      %v274 = vlaneseq
      %v275 = vshrl.u32 %v274, 7
      %v276 = vsub.s32 3, %v275
      %v277 = vrot.slane %v196, %v276
      %v278 = vlaneseq
      %v279 = vshrl.u32 %v278, 7
      %v280 = vsub.s32 4, %v279
      %v281 = vrot.slane %v196, %v280
      %v282 = vlaneseq
      %v283 = vshrl.u32 %v282, 7
      %v284 = vsub.s32 5, %v283
      %v285 = vrot.slane %v196, %v284
      %v286 = vlaneseq
      %v287 = vshrl.u32 %v286, 7
      %v288 = vsub.s32 6, %v287
      %v289 = vrot.slane %v196, %v288
      %v290 = vlaneseq
      %v291 = vshrl.u32 %v290, 7
      %v292 = vsub.s32 7, %v291
      %v293 = vrot.slane %v196, %v292
      %vm294 = vcmp.eq.s32.totalorder %v198, %v265
      %vm295 = vcmp.eq.s32.totalorder %v198, %v269
      %vm296 = vcmp.eq.s32.totalorder %v198, %v273
      %vm297 = vcmp.eq.s32.totalorder %v198, %v277
      %vm298 = vcmp.eq.s32.totalorder %v198, %v281
      %vm299 = vcmp.eq.s32.totalorder %v198, %v285
      %vm300 = vcmp.eq.s32.totalorder %v198, %v289
      %vm301 = vcmp.eq.s32.totalorder %v198, %v293
      %vm302 = vcmp.eq.s32.totalorder %v199, %v265
      %vm303 = vcmp.eq.s32.totalorder %v199, %v269
      %vm304 = vcmp.eq.s32.totalorder %v199, %v273
      %vm305 = vcmp.eq.s32.totalorder %v199, %v277
      %vm306 = vcmp.eq.s32.totalorder %v199, %v281
      %vm307 = vcmp.eq.s32.totalorder %v199, %v285
      %vm308 = vcmp.eq.s32.totalorder %v199, %v289
      %vm309 = vcmp.eq.s32.totalorder %v199, %v293
      %vm310 = vcmp.eq.s32.totalorder %v200, %v265
      %vm311 = vcmp.eq.s32.totalorder %v200, %v269
      %vm312 = vcmp.eq.s32.totalorder %v200, %v273
      %vm313 = vcmp.eq.s32.totalorder %v200, %v277
      %vm314 = vcmp.eq.s32.totalorder %v200, %v281
      %vm315 = vcmp.eq.s32.totalorder %v200, %v285
      %vm316 = vcmp.eq.s32.totalorder %v200, %v289
      %vm317 = vcmp.eq.s32.totalorder %v200, %v293
      %vm318 = vcmp.eq.s32.totalorder %v201, %v265
      %vm319 = vcmp.eq.s32.totalorder %v201, %v269
      %vm320 = vcmp.eq.s32.totalorder %v201, %v273
      %vm321 = vcmp.eq.s32.totalorder %v201, %v277
      %vm322 = vcmp.eq.s32.totalorder %v201, %v281
      %vm323 = vcmp.eq.s32.totalorder %v201, %v285
      %vm324 = vcmp.eq.s32.totalorder %v201, %v289
      %vm325 = vcmp.eq.s32.totalorder %v201, %v293
      %vm326 = vcmp.eq.s32.totalorder %v202, %v265
      %vm327 = vcmp.eq.s32.totalorder %v202, %v269
      %vm328 = vcmp.eq.s32.totalorder %v202, %v273
      %vm329 = vcmp.eq.s32.totalorder %v202, %v277
      %vm330 = vcmp.eq.s32.totalorder %v202, %v281
      %vm331 = vcmp.eq.s32.totalorder %v202, %v285
      %vm332 = vcmp.eq.s32.totalorder %v202, %v289
      %vm333 = vcmp.eq.s32.totalorder %v202, %v293
      %vm334 = vcmp.eq.s32.totalorder %v203, %v265
      %vm335 = vcmp.eq.s32.totalorder %v203, %v269
      %vm336 = vcmp.eq.s32.totalorder %v203, %v273
      %vm337 = vcmp.eq.s32.totalorder %v203, %v277
      %vm338 = vcmp.eq.s32.totalorder %v203, %v281
      %vm339 = vcmp.eq.s32.totalorder %v203, %v285
      %vm340 = vcmp.eq.s32.totalorder %v203, %v289
      %vm341 = vcmp.eq.s32.totalorder %v203, %v293
      %vm342 = vcmp.eq.s32.totalorder %v204, %v265
      %vm343 = vcmp.eq.s32.totalorder %v204, %v269
      %vm344 = vcmp.eq.s32.totalorder %v204, %v273
      %vm345 = vcmp.eq.s32.totalorder %v204, %v277
      %vm346 = vcmp.eq.s32.totalorder %v204, %v281
      %vm347 = vcmp.eq.s32.totalorder %v204, %v285
      %vm348 = vcmp.eq.s32.totalorder %v204, %v289
      %vm349 = vcmp.eq.s32.totalorder %v204, %v293
      %vm350 = vcmp.eq.s32.totalorder %v205, %v265
      %vm351 = vcmp.eq.s32.totalorder %v205, %v269
      %vm352 = vcmp.eq.s32.totalorder %v205, %v273
      %vm353 = vcmp.eq.s32.totalorder %v205, %v277
      %vm354 = vcmp.eq.s32.totalorder %v205, %v281
      %vm355 = vcmp.eq.s32.totalorder %v205, %v285
      %vm356 = vcmp.eq.s32.totalorder %v205, %v289
      %vm357 = vcmp.eq.s32.totalorder %v205, %v293
      %vm358 = vcmp.eq.s32.totalorder %v206, %v265
      %vm359 = vcmp.eq.s32.totalorder %v206, %v269
      %vm360 = vcmp.eq.s32.totalorder %v206, %v273
      %vm361 = vcmp.eq.s32.totalorder %v206, %v277
      %vm362 = vcmp.eq.s32.totalorder %v206, %v281
      %vm363 = vcmp.eq.s32.totalorder %v206, %v285
      %vm364 = vcmp.eq.s32.totalorder %v206, %v289
      %vm365 = vcmp.eq.s32.totalorder %v206, %v293
      %vm366 = vcmp.eq.s32.totalorder %v207, %v265
      %vm367 = vcmp.eq.s32.totalorder %v207, %v269
      %vm368 = vcmp.eq.s32.totalorder %v207, %v273
      %vm369 = vcmp.eq.s32.totalorder %v207, %v277
      %vm370 = vcmp.eq.s32.totalorder %v207, %v281
      %vm371 = vcmp.eq.s32.totalorder %v207, %v285
      %vm372 = vcmp.eq.s32.totalorder %v207, %v289
      %vm373 = vcmp.eq.s32.totalorder %v207, %v293
      %vm374 = vcmp.eq.s32.totalorder %v208, %v265
      %vm375 = vcmp.eq.s32.totalorder %v208, %v269
      %vm376 = vcmp.eq.s32.totalorder %v208, %v273
      %vm377 = vcmp.eq.s32.totalorder %v208, %v277
      %vm378 = vcmp.eq.s32.totalorder %v208, %v281
      %vm379 = vcmp.eq.s32.totalorder %v208, %v285
      %vm380 = vcmp.eq.s32.totalorder %v208, %v289
      %vm381 = vcmp.eq.s32.totalorder %v208, %v293
      %vm382 = vcmp.eq.s32.totalorder %v209, %v265
      %vm383 = vcmp.eq.s32.totalorder %v209, %v269
      %vm384 = vcmp.eq.s32.totalorder %v209, %v273
      %vm385 = vcmp.eq.s32.totalorder %v209, %v277
      %vm386 = vcmp.eq.s32.totalorder %v209, %v281
      %vm387 = vcmp.eq.s32.totalorder %v209, %v285
      %vm388 = vcmp.eq.s32.totalorder %v209, %v289
      %vm389 = vcmp.eq.s32.totalorder %v209, %v293
      %vm390 = vcmp.eq.s32.totalorder %v210, %v265
      %vm391 = vcmp.eq.s32.totalorder %v210, %v269
      %vm392 = vcmp.eq.s32.totalorder %v210, %v273
      %vm393 = vcmp.eq.s32.totalorder %v210, %v277
      %vm394 = vcmp.eq.s32.totalorder %v210, %v281
      %vm395 = vcmp.eq.s32.totalorder %v210, %v285
      %vm396 = vcmp.eq.s32.totalorder %v210, %v289
      %vm397 = vcmp.eq.s32.totalorder %v210, %v293
      %vm398 = vcmp.eq.s32.totalorder %v211, %v265
      %vm399 = vcmp.eq.s32.totalorder %v211, %v269
      %vm400 = vcmp.eq.s32.totalorder %v211, %v273
      %vm401 = vcmp.eq.s32.totalorder %v211, %v277
      %vm402 = vcmp.eq.s32.totalorder %v211, %v281
      %vm403 = vcmp.eq.s32.totalorder %v211, %v285
      %vm404 = vcmp.eq.s32.totalorder %v211, %v289
      %vm405 = vcmp.eq.s32.totalorder %v211, %v293
      %vm406 = vcmp.eq.s32.totalorder %v212, %v265
      %vm407 = vcmp.eq.s32.totalorder %v212, %v269
      %vm408 = vcmp.eq.s32.totalorder %v212, %v273
      %vm409 = vcmp.eq.s32.totalorder %v212, %v277
      %vm410 = vcmp.eq.s32.totalorder %v212, %v281
      %vm411 = vcmp.eq.s32.totalorder %v212, %v285
      %vm412 = vcmp.eq.s32.totalorder %v212, %v289
      %vm413 = vcmp.eq.s32.totalorder %v212, %v293
      %vm414 = vcmp.eq.s32.totalorder %v213, %v265
      %vm415 = vcmp.eq.s32.totalorder %v213, %v269
      %vm416 = vcmp.eq.s32.totalorder %v213, %v273
      %vm417 = vcmp.eq.s32.totalorder %v213, %v277
      %vm418 = vcmp.eq.s32.totalorder %v213, %v281
      %vm419 = vcmp.eq.s32.totalorder %v213, %v285
      %vm420 = vcmp.eq.s32.totalorder %v213, %v289
      %vm421 = vcmp.eq.s32.totalorder %v213, %v293
      %vm422 = vcmp.eq.s32.totalorder %v214, %v265
      %vm423 = vcmp.eq.s32.totalorder %v214, %v269
      %vm424 = vcmp.eq.s32.totalorder %v214, %v273
      %vm425 = vcmp.eq.s32.totalorder %v214, %v277
      %vm426 = vcmp.eq.s32.totalorder %v214, %v281
      %vm427 = vcmp.eq.s32.totalorder %v214, %v285
      %vm428 = vcmp.eq.s32.totalorder %v214, %v289
      %vm429 = vcmp.eq.s32.totalorder %v214, %v293
      %vm430 = vcmp.eq.s32.totalorder %v215, %v265
      %vm431 = vcmp.eq.s32.totalorder %v215, %v269
      %vm432 = vcmp.eq.s32.totalorder %v215, %v273
      %vm433 = vcmp.eq.s32.totalorder %v215, %v277
      %vm434 = vcmp.eq.s32.totalorder %v215, %v281
      %vm435 = vcmp.eq.s32.totalorder %v215, %v285
      %vm436 = vcmp.eq.s32.totalorder %v215, %v289
      %vm437 = vcmp.eq.s32.totalorder %v215, %v293
      %vm438 = vcmp.eq.s32.totalorder %v216, %v265
      %vm439 = vcmp.eq.s32.totalorder %v216, %v269
      %vm440 = vcmp.eq.s32.totalorder %v216, %v273
      %vm441 = vcmp.eq.s32.totalorder %v216, %v277
      %vm442 = vcmp.eq.s32.totalorder %v216, %v281
      %vm443 = vcmp.eq.s32.totalorder %v216, %v285
      %vm444 = vcmp.eq.s32.totalorder %v216, %v289
      %vm445 = vcmp.eq.s32.totalorder %v216, %v293
      %vm446 = vcmp.eq.s32.totalorder %v217, %v265
      %vm447 = vcmp.eq.s32.totalorder %v217, %v269
      %vm448 = vcmp.eq.s32.totalorder %v217, %v273
      %vm449 = vcmp.eq.s32.totalorder %v217, %v277
      %vm450 = vcmp.eq.s32.totalorder %v217, %v281
      %vm451 = vcmp.eq.s32.totalorder %v217, %v285
      %vm452 = vcmp.eq.s32.totalorder %v217, %v289
      %vm453 = vcmp.eq.s32.totalorder %v217, %v293
      %vm454 = vcmp.eq.s32.totalorder %v218, %v265
      %vm455 = vcmp.eq.s32.totalorder %v218, %v269
      %vm456 = vcmp.eq.s32.totalorder %v218, %v273
      %vm457 = vcmp.eq.s32.totalorder %v218, %v277
      %vm458 = vcmp.eq.s32.totalorder %v218, %v281
      %vm459 = vcmp.eq.s32.totalorder %v218, %v285
      %vm460 = vcmp.eq.s32.totalorder %v218, %v289
      %vm461 = vcmp.eq.s32.totalorder %v218, %v293
      %vm462 = vcmp.eq.s32.totalorder %v219, %v265
      %vm463 = vcmp.eq.s32.totalorder %v219, %v269
      %vm464 = vcmp.eq.s32.totalorder %v219, %v273
      %vm465 = vcmp.eq.s32.totalorder %v219, %v277
      %vm466 = vcmp.eq.s32.totalorder %v219, %v281
      %vm467 = vcmp.eq.s32.totalorder %v219, %v285
      %vm468 = vcmp.eq.s32.totalorder %v219, %v289
      %vm469 = vcmp.eq.s32.totalorder %v219, %v293
      %vm470 = vcmp.eq.s32.totalorder %v220, %v265
      %vm471 = vcmp.eq.s32.totalorder %v220, %v269
      %vm472 = vcmp.eq.s32.totalorder %v220, %v273
      %vm473 = vcmp.eq.s32.totalorder %v220, %v277
      %vm474 = vcmp.eq.s32.totalorder %v220, %v281
      %vm475 = vcmp.eq.s32.totalorder %v220, %v285
      %vm476 = vcmp.eq.s32.totalorder %v220, %v289
      %vm477 = vcmp.eq.s32.totalorder %v220, %v293
      %vm478 = vcmp.eq.s32.totalorder %v221, %v265
      %vm479 = vcmp.eq.s32.totalorder %v221, %v269
      %vm480 = vcmp.eq.s32.totalorder %v221, %v273
      %vm481 = vcmp.eq.s32.totalorder %v221, %v277
      %vm482 = vcmp.eq.s32.totalorder %v221, %v281
      %vm483 = vcmp.eq.s32.totalorder %v221, %v285
      %vm484 = vcmp.eq.s32.totalorder %v221, %v289
      %vm485 = vcmp.eq.s32.totalorder %v221, %v293
      %vm486 = vcmp.eq.s32.totalorder %v222, %v265
      %vm487 = vcmp.eq.s32.totalorder %v222, %v269
      %vm488 = vcmp.eq.s32.totalorder %v222, %v273
      %vm489 = vcmp.eq.s32.totalorder %v222, %v277
      %vm490 = vcmp.eq.s32.totalorder %v222, %v281
      %vm491 = vcmp.eq.s32.totalorder %v222, %v285
      %vm492 = vcmp.eq.s32.totalorder %v222, %v289
      %vm493 = vcmp.eq.s32.totalorder %v222, %v293
      %vm494 = vcmp.eq.s32.totalorder %v223, %v265
      %vm495 = vcmp.eq.s32.totalorder %v223, %v269
      %vm496 = vcmp.eq.s32.totalorder %v223, %v273
      %vm497 = vcmp.eq.s32.totalorder %v223, %v277
      %vm498 = vcmp.eq.s32.totalorder %v223, %v281
      %vm499 = vcmp.eq.s32.totalorder %v223, %v285
      %vm500 = vcmp.eq.s32.totalorder %v223, %v289
      %vm501 = vcmp.eq.s32.totalorder %v223, %v293
      %vm502 = vcmp.eq.s32.totalorder %v224, %v265
      %vm503 = vcmp.eq.s32.totalorder %v224, %v269
      %vm504 = vcmp.eq.s32.totalorder %v224, %v273
      %vm505 = vcmp.eq.s32.totalorder %v224, %v277
      %vm506 = vcmp.eq.s32.totalorder %v224, %v281
      %vm507 = vcmp.eq.s32.totalorder %v224, %v285
      %vm508 = vcmp.eq.s32.totalorder %v224, %v289
      %vm509 = vcmp.eq.s32.totalorder %v224, %v293
      %vm510 = vcmp.eq.s32.totalorder %v225, %v265
      %vm511 = vcmp.eq.s32.totalorder %v225, %v269
      %vm512 = vcmp.eq.s32.totalorder %v225, %v273
      %vm513 = vcmp.eq.s32.totalorder %v225, %v277
      %vm514 = vcmp.eq.s32.totalorder %v225, %v281
      %vm515 = vcmp.eq.s32.totalorder %v225, %v285
      %vm516 = vcmp.eq.s32.totalorder %v225, %v289
      %vm517 = vcmp.eq.s32.totalorder %v225, %v293
      %vm518 = vcmp.eq.s32.totalorder %v226, %v265
      %vm519 = vcmp.eq.s32.totalorder %v226, %v269
      %vm520 = vcmp.eq.s32.totalorder %v226, %v273
      %vm521 = vcmp.eq.s32.totalorder %v226, %v277
      %vm522 = vcmp.eq.s32.totalorder %v226, %v281
      %vm523 = vcmp.eq.s32.totalorder %v226, %v285
      %vm524 = vcmp.eq.s32.totalorder %v226, %v289
      %vm525 = vcmp.eq.s32.totalorder %v226, %v293
      %vm526 = vcmp.eq.s32.totalorder %v227, %v265
      %vm527 = vcmp.eq.s32.totalorder %v227, %v269
      %vm528 = vcmp.eq.s32.totalorder %v227, %v273
      %vm529 = vcmp.eq.s32.totalorder %v227, %v277
      %vm530 = vcmp.eq.s32.totalorder %v227, %v281
      %vm531 = vcmp.eq.s32.totalorder %v227, %v285
      %vm532 = vcmp.eq.s32.totalorder %v227, %v289
      %vm533 = vcmp.eq.s32.totalorder %v227, %v293
      %vm534 = vcmp.eq.s32.totalorder %v228, %v265
      %vm535 = vcmp.eq.s32.totalorder %v228, %v269
      %vm536 = vcmp.eq.s32.totalorder %v228, %v273
      %vm537 = vcmp.eq.s32.totalorder %v228, %v277
      %vm538 = vcmp.eq.s32.totalorder %v228, %v281
      %vm539 = vcmp.eq.s32.totalorder %v228, %v285
      %vm540 = vcmp.eq.s32.totalorder %v228, %v289
      %vm541 = vcmp.eq.s32.totalorder %v228, %v293
      %vm542 = vcmp.eq.s32.totalorder %v229, %v265
      %vm543 = vcmp.eq.s32.totalorder %v229, %v269
      %vm544 = vcmp.eq.s32.totalorder %v229, %v273
      %vm545 = vcmp.eq.s32.totalorder %v229, %v277
      %vm546 = vcmp.eq.s32.totalorder %v229, %v281
      %vm547 = vcmp.eq.s32.totalorder %v229, %v285
      %vm548 = vcmp.eq.s32.totalorder %v229, %v289
      %vm549 = vcmp.eq.s32.totalorder %v229, %v293
      %vm550 = vcmp.eq.s32.totalorder %v230, %v265
      %vm551 = vcmp.eq.s32.totalorder %v230, %v269
      %vm552 = vcmp.eq.s32.totalorder %v230, %v273
      %vm553 = vcmp.eq.s32.totalorder %v230, %v277
      %vm554 = vcmp.eq.s32.totalorder %v230, %v281
      %vm555 = vcmp.eq.s32.totalorder %v230, %v285
      %vm556 = vcmp.eq.s32.totalorder %v230, %v289
      %vm557 = vcmp.eq.s32.totalorder %v230, %v293
      %vm558 = vcmp.eq.s32.totalorder %v231, %v265
      %vm559 = vcmp.eq.s32.totalorder %v231, %v269
      %vm560 = vcmp.eq.s32.totalorder %v231, %v273
      %vm561 = vcmp.eq.s32.totalorder %v231, %v277
      %vm562 = vcmp.eq.s32.totalorder %v231, %v281
      %vm563 = vcmp.eq.s32.totalorder %v231, %v285
      %vm564 = vcmp.eq.s32.totalorder %v231, %v289
      %vm565 = vcmp.eq.s32.totalorder %v231, %v293
      %vm566 = vcmp.eq.s32.totalorder %v232, %v265
      %vm567 = vcmp.eq.s32.totalorder %v232, %v269
      %vm568 = vcmp.eq.s32.totalorder %v232, %v273
      %vm569 = vcmp.eq.s32.totalorder %v232, %v277
      %vm570 = vcmp.eq.s32.totalorder %v232, %v281
      %vm571 = vcmp.eq.s32.totalorder %v232, %v285
      %vm572 = vcmp.eq.s32.totalorder %v232, %v289
      %vm573 = vcmp.eq.s32.totalorder %v232, %v293
      %vm574 = vcmp.eq.s32.totalorder %v233, %v265
      %vm575 = vcmp.eq.s32.totalorder %v233, %v269
      %vm576 = vcmp.eq.s32.totalorder %v233, %v273
      %vm577 = vcmp.eq.s32.totalorder %v233, %v277
      %vm578 = vcmp.eq.s32.totalorder %v233, %v281
      %vm579 = vcmp.eq.s32.totalorder %v233, %v285
      %vm580 = vcmp.eq.s32.totalorder %v233, %v289
      %vm581 = vcmp.eq.s32.totalorder %v233, %v293
      %vm582 = vcmp.eq.s32.totalorder %v234, %v265
      %vm583 = vcmp.eq.s32.totalorder %v234, %v269
      %vm584 = vcmp.eq.s32.totalorder %v234, %v273
      %vm585 = vcmp.eq.s32.totalorder %v234, %v277
      %vm586 = vcmp.eq.s32.totalorder %v234, %v281
      %vm587 = vcmp.eq.s32.totalorder %v234, %v285
      %vm588 = vcmp.eq.s32.totalorder %v234, %v289
      %vm589 = vcmp.eq.s32.totalorder %v234, %v293
      %vm590 = vcmp.eq.s32.totalorder %v235, %v265
      %vm591 = vcmp.eq.s32.totalorder %v235, %v269
      %vm592 = vcmp.eq.s32.totalorder %v235, %v273
      %vm593 = vcmp.eq.s32.totalorder %v235, %v277
      %vm594 = vcmp.eq.s32.totalorder %v235, %v281
      %vm595 = vcmp.eq.s32.totalorder %v235, %v285
      %vm596 = vcmp.eq.s32.totalorder %v235, %v289
      %vm597 = vcmp.eq.s32.totalorder %v235, %v293
      %vm598 = vcmp.eq.s32.totalorder %v236, %v265
      %vm599 = vcmp.eq.s32.totalorder %v236, %v269
      %vm600 = vcmp.eq.s32.totalorder %v236, %v273
      %vm601 = vcmp.eq.s32.totalorder %v236, %v277
      %vm602 = vcmp.eq.s32.totalorder %v236, %v281
      %vm603 = vcmp.eq.s32.totalorder %v236, %v285
      %vm604 = vcmp.eq.s32.totalorder %v236, %v289
      %vm605 = vcmp.eq.s32.totalorder %v236, %v293
      %vm606 = vcmp.eq.s32.totalorder %v237, %v265
      %vm607 = vcmp.eq.s32.totalorder %v237, %v269
      %vm608 = vcmp.eq.s32.totalorder %v237, %v273
      %vm609 = vcmp.eq.s32.totalorder %v237, %v277
      %vm610 = vcmp.eq.s32.totalorder %v237, %v281
      %vm611 = vcmp.eq.s32.totalorder %v237, %v285
      %vm612 = vcmp.eq.s32.totalorder %v237, %v289
      %vm613 = vcmp.eq.s32.totalorder %v237, %v293
      %vm614 = vcmp.eq.s32.totalorder %v238, %v265
      %vm615 = vcmp.eq.s32.totalorder %v238, %v269
      %vm616 = vcmp.eq.s32.totalorder %v238, %v273
      %vm617 = vcmp.eq.s32.totalorder %v238, %v277
      %vm618 = vcmp.eq.s32.totalorder %v238, %v281
      %vm619 = vcmp.eq.s32.totalorder %v238, %v285
      %vm620 = vcmp.eq.s32.totalorder %v238, %v289
      %vm621 = vcmp.eq.s32.totalorder %v238, %v293
      %vm622 = vcmp.eq.s32.totalorder %v239, %v265
      %vm623 = vcmp.eq.s32.totalorder %v239, %v269
      %vm624 = vcmp.eq.s32.totalorder %v239, %v273
      %vm625 = vcmp.eq.s32.totalorder %v239, %v277
      %vm626 = vcmp.eq.s32.totalorder %v239, %v281
      %vm627 = vcmp.eq.s32.totalorder %v239, %v285
      %vm628 = vcmp.eq.s32.totalorder %v239, %v289
      %vm629 = vcmp.eq.s32.totalorder %v239, %v293
      %vm630 = vcmp.eq.s32.totalorder %v240, %v265
      %vm631 = vcmp.eq.s32.totalorder %v240, %v269
      %vm632 = vcmp.eq.s32.totalorder %v240, %v273
      %vm633 = vcmp.eq.s32.totalorder %v240, %v277
      %vm634 = vcmp.eq.s32.totalorder %v240, %v281
      %vm635 = vcmp.eq.s32.totalorder %v240, %v285
      %vm636 = vcmp.eq.s32.totalorder %v240, %v289
      %vm637 = vcmp.eq.s32.totalorder %v240, %v293
      %vm638 = vcmp.eq.s32.totalorder %v241, %v265
      %vm639 = vcmp.eq.s32.totalorder %v241, %v269
      %vm640 = vcmp.eq.s32.totalorder %v241, %v273
      %vm641 = vcmp.eq.s32.totalorder %v241, %v277
      %vm642 = vcmp.eq.s32.totalorder %v241, %v281
      %vm643 = vcmp.eq.s32.totalorder %v241, %v285
      %vm644 = vcmp.eq.s32.totalorder %v241, %v289
      %vm645 = vcmp.eq.s32.totalorder %v241, %v293
      %vm646 = vcmp.eq.s32.totalorder %v242, %v265
      %vm647 = vcmp.eq.s32.totalorder %v242, %v269
      %vm648 = vcmp.eq.s32.totalorder %v242, %v273
      %vm649 = vcmp.eq.s32.totalorder %v242, %v277
      %vm650 = vcmp.eq.s32.totalorder %v242, %v281
      %vm651 = vcmp.eq.s32.totalorder %v242, %v285
      %vm652 = vcmp.eq.s32.totalorder %v242, %v289
      %vm653 = vcmp.eq.s32.totalorder %v242, %v293
      %vm654 = vcmp.eq.s32.totalorder %v243, %v265
      %vm655 = vcmp.eq.s32.totalorder %v243, %v269
      %vm656 = vcmp.eq.s32.totalorder %v243, %v273
      %vm657 = vcmp.eq.s32.totalorder %v243, %v277
      %vm658 = vcmp.eq.s32.totalorder %v243, %v281
      %vm659 = vcmp.eq.s32.totalorder %v243, %v285
      %vm660 = vcmp.eq.s32.totalorder %v243, %v289
      %vm661 = vcmp.eq.s32.totalorder %v243, %v293
      %vm662 = vcmp.eq.s32.totalorder %v244, %v265
      %vm663 = vcmp.eq.s32.totalorder %v244, %v269
      %vm664 = vcmp.eq.s32.totalorder %v244, %v273
      %vm665 = vcmp.eq.s32.totalorder %v244, %v277
      %vm666 = vcmp.eq.s32.totalorder %v244, %v281
      %vm667 = vcmp.eq.s32.totalorder %v244, %v285
      %vm668 = vcmp.eq.s32.totalorder %v244, %v289
      %vm669 = vcmp.eq.s32.totalorder %v244, %v293
      %vm670 = vcmp.eq.s32.totalorder %v245, %v265
      %vm671 = vcmp.eq.s32.totalorder %v245, %v269
      %vm672 = vcmp.eq.s32.totalorder %v245, %v273
      %vm673 = vcmp.eq.s32.totalorder %v245, %v277
      %vm674 = vcmp.eq.s32.totalorder %v245, %v281
      %vm675 = vcmp.eq.s32.totalorder %v245, %v285
      %vm676 = vcmp.eq.s32.totalorder %v245, %v289
      %vm677 = vcmp.eq.s32.totalorder %v245, %v293
      %vm678 = vcmp.eq.s32.totalorder %v246, %v265
      %vm679 = vcmp.eq.s32.totalorder %v246, %v269
      %vm680 = vcmp.eq.s32.totalorder %v246, %v273
      %vm681 = vcmp.eq.s32.totalorder %v246, %v277
      %vm682 = vcmp.eq.s32.totalorder %v246, %v281
      %vm683 = vcmp.eq.s32.totalorder %v246, %v285
      %vm684 = vcmp.eq.s32.totalorder %v246, %v289
      %vm685 = vcmp.eq.s32.totalorder %v246, %v293
      %vm686 = vcmp.eq.s32.totalorder %v247, %v265
      %vm687 = vcmp.eq.s32.totalorder %v247, %v269
      %vm688 = vcmp.eq.s32.totalorder %v247, %v273
      %vm689 = vcmp.eq.s32.totalorder %v247, %v277
      %vm690 = vcmp.eq.s32.totalorder %v247, %v281
      %vm691 = vcmp.eq.s32.totalorder %v247, %v285
      %vm692 = vcmp.eq.s32.totalorder %v247, %v289
      %vm693 = vcmp.eq.s32.totalorder %v247, %v293
      %vm694 = vcmp.eq.s32.totalorder %v248, %v265
      %vm695 = vcmp.eq.s32.totalorder %v248, %v269
      %vm696 = vcmp.eq.s32.totalorder %v248, %v273
      %vm697 = vcmp.eq.s32.totalorder %v248, %v277
      %vm698 = vcmp.eq.s32.totalorder %v248, %v281
      %vm699 = vcmp.eq.s32.totalorder %v248, %v285
      %vm700 = vcmp.eq.s32.totalorder %v248, %v289
      %vm701 = vcmp.eq.s32.totalorder %v248, %v293
      %vm702 = vcmp.eq.s32.totalorder %v249, %v265
      %vm703 = vcmp.eq.s32.totalorder %v249, %v269
      %vm704 = vcmp.eq.s32.totalorder %v249, %v273
      %vm705 = vcmp.eq.s32.totalorder %v249, %v277
      %vm706 = vcmp.eq.s32.totalorder %v249, %v281
      %vm707 = vcmp.eq.s32.totalorder %v249, %v285
      %vm708 = vcmp.eq.s32.totalorder %v249, %v289
      %vm709 = vcmp.eq.s32.totalorder %v249, %v293
      %vm710 = vcmp.eq.s32.totalorder %v250, %v265
      %vm711 = vcmp.eq.s32.totalorder %v250, %v269
      %vm712 = vcmp.eq.s32.totalorder %v250, %v273
      %vm713 = vcmp.eq.s32.totalorder %v250, %v277
      %vm714 = vcmp.eq.s32.totalorder %v250, %v281
      %vm715 = vcmp.eq.s32.totalorder %v250, %v285
      %vm716 = vcmp.eq.s32.totalorder %v250, %v289
      %vm717 = vcmp.eq.s32.totalorder %v250, %v293
      %vm718 = vcmp.eq.s32.totalorder %v251, %v265
      %vm719 = vcmp.eq.s32.totalorder %v251, %v269
      %vm720 = vcmp.eq.s32.totalorder %v251, %v273
      %vm721 = vcmp.eq.s32.totalorder %v251, %v277
      %vm722 = vcmp.eq.s32.totalorder %v251, %v281
      %vm723 = vcmp.eq.s32.totalorder %v251, %v285
      %vm724 = vcmp.eq.s32.totalorder %v251, %v289
      %vm725 = vcmp.eq.s32.totalorder %v251, %v293
      %vm726 = vcmp.eq.s32.totalorder %v252, %v265
      %vm727 = vcmp.eq.s32.totalorder %v252, %v269
      %vm728 = vcmp.eq.s32.totalorder %v252, %v273
      %vm729 = vcmp.eq.s32.totalorder %v252, %v277
      %vm730 = vcmp.eq.s32.totalorder %v252, %v281
      %vm731 = vcmp.eq.s32.totalorder %v252, %v285
      %vm732 = vcmp.eq.s32.totalorder %v252, %v289
      %vm733 = vcmp.eq.s32.totalorder %v252, %v293
      %vm734 = vcmp.eq.s32.totalorder %v253, %v265
      %vm735 = vcmp.eq.s32.totalorder %v253, %v269
      %vm736 = vcmp.eq.s32.totalorder %v253, %v273
      %vm737 = vcmp.eq.s32.totalorder %v253, %v277
      %vm738 = vcmp.eq.s32.totalorder %v253, %v281
      %vm739 = vcmp.eq.s32.totalorder %v253, %v285
      %vm740 = vcmp.eq.s32.totalorder %v253, %v289
      %vm741 = vcmp.eq.s32.totalorder %v253, %v293
      %vm742 = vcmp.eq.s32.totalorder %v254, %v265
      %vm743 = vcmp.eq.s32.totalorder %v254, %v269
      %vm744 = vcmp.eq.s32.totalorder %v254, %v273
      %vm745 = vcmp.eq.s32.totalorder %v254, %v277
      %vm746 = vcmp.eq.s32.totalorder %v254, %v281
      %vm747 = vcmp.eq.s32.totalorder %v254, %v285
      %vm748 = vcmp.eq.s32.totalorder %v254, %v289
      %vm749 = vcmp.eq.s32.totalorder %v254, %v293
      %vm750 = vcmp.eq.s32.totalorder %v255, %v265
      %vm751 = vcmp.eq.s32.totalorder %v255, %v269
      %vm752 = vcmp.eq.s32.totalorder %v255, %v273
      %vm753 = vcmp.eq.s32.totalorder %v255, %v277
      %vm754 = vcmp.eq.s32.totalorder %v255, %v281
      %vm755 = vcmp.eq.s32.totalorder %v255, %v285
      %vm756 = vcmp.eq.s32.totalorder %v255, %v289
      %vm757 = vcmp.eq.s32.totalorder %v255, %v293
      %vm758 = vcmp.eq.s32.totalorder %v256, %v265
      %vm759 = vcmp.eq.s32.totalorder %v256, %v269
      %vm760 = vcmp.eq.s32.totalorder %v256, %v273
      %vm761 = vcmp.eq.s32.totalorder %v256, %v277
      %vm762 = vcmp.eq.s32.totalorder %v256, %v281
      %vm763 = vcmp.eq.s32.totalorder %v256, %v285
      %vm764 = vcmp.eq.s32.totalorder %v256, %v289
      %vm765 = vcmp.eq.s32.totalorder %v256, %v293
      %vm766 = vcmp.eq.s32.totalorder %v257, %v265
      %vm767 = vcmp.eq.s32.totalorder %v257, %v269
      %vm768 = vcmp.eq.s32.totalorder %v257, %v273
      %vm769 = vcmp.eq.s32.totalorder %v257, %v277
      %vm770 = vcmp.eq.s32.totalorder %v257, %v281
      %vm771 = vcmp.eq.s32.totalorder %v257, %v285
      %vm772 = vcmp.eq.s32.totalorder %v257, %v289
      %vm773 = vcmp.eq.s32.totalorder %v257, %v293
      %vm774 = vcmp.eq.s32.totalorder %v258, %v265
      %vm775 = vcmp.eq.s32.totalorder %v258, %v269
      %vm776 = vcmp.eq.s32.totalorder %v258, %v273
      %vm777 = vcmp.eq.s32.totalorder %v258, %v277
      %vm778 = vcmp.eq.s32.totalorder %v258, %v281
      %vm779 = vcmp.eq.s32.totalorder %v258, %v285
      %vm780 = vcmp.eq.s32.totalorder %v258, %v289
      %vm781 = vcmp.eq.s32.totalorder %v258, %v293
      %vm782 = vcmp.eq.s32.totalorder %v259, %v265
      %vm783 = vcmp.eq.s32.totalorder %v259, %v269
      %vm784 = vcmp.eq.s32.totalorder %v259, %v273
      %vm785 = vcmp.eq.s32.totalorder %v259, %v277
      %vm786 = vcmp.eq.s32.totalorder %v259, %v281
      %vm787 = vcmp.eq.s32.totalorder %v259, %v285
      %vm788 = vcmp.eq.s32.totalorder %v259, %v289
      %vm789 = vcmp.eq.s32.totalorder %v259, %v293
      %vm790 = vcmp.eq.s32.totalorder %v260, %v265
      %vm791 = vcmp.eq.s32.totalorder %v260, %v269
      %vm792 = vcmp.eq.s32.totalorder %v260, %v273
      %vm793 = vcmp.eq.s32.totalorder %v260, %v277
      %vm794 = vcmp.eq.s32.totalorder %v260, %v281
      %vm795 = vcmp.eq.s32.totalorder %v260, %v285
      %vm796 = vcmp.eq.s32.totalorder %v260, %v289
      %vm797 = vcmp.eq.s32.totalorder %v260, %v293
      %vm798 = vcmp.eq.s32.totalorder %v261, %v265
      %vm799 = vcmp.eq.s32.totalorder %v261, %v269
      %vm800 = vcmp.eq.s32.totalorder %v261, %v273
      %vm801 = vcmp.eq.s32.totalorder %v261, %v277
      %vm802 = vcmp.eq.s32.totalorder %v261, %v281
      %vm803 = vcmp.eq.s32.totalorder %v261, %v285
      %vm804 = vcmp.eq.s32.totalorder %v261, %v289
      %vm805 = vcmp.eq.s32.totalorder %v261, %v293
      %v806 = vsel %vm294, 1, 0
      %v807 = vsel %vm295, 1, 0
      %v808 = vsel %vm296, 1, 0
      %v809 = vsel %vm297, 1, 0
      %v810 = vsel %vm298, 1, 0
      %v811 = vsel %vm299, 1, 0
      %v812 = vsel %vm300, 1, 0
      %v813 = vsel %vm301, 1, 0
      %v814 = vsel %vm302, 1, 0
      %v815 = vsel %vm303, 1, 0
      %v816 = vsel %vm304, 1, 0
      %v817 = vsel %vm305, 1, 0
      %v818 = vsel %vm306, 1, 0
      %v819 = vsel %vm307, 1, 0
      %v820 = vsel %vm308, 1, 0
      %v821 = vsel %vm309, 1, 0
      %v822 = vsel %vm310, 1, 0
      %v823 = vsel %vm311, 1, 0
      %v824 = vsel %vm312, 1, 0
      %v825 = vsel %vm313, 1, 0
      %v826 = vsel %vm314, 1, 0
      %v827 = vsel %vm315, 1, 0
      %v828 = vsel %vm316, 1, 0
      %v829 = vsel %vm317, 1, 0
      %v830 = vsel %vm318, 1, 0
      %v831 = vsel %vm319, 1, 0
      %v832 = vsel %vm320, 1, 0
      %v833 = vsel %vm321, 1, 0
      %v834 = vsel %vm322, 1, 0
      %v835 = vsel %vm323, 1, 0
      %v836 = vsel %vm324, 1, 0
      %v837 = vsel %vm325, 1, 0
      %v838 = vsel %vm326, 1, 0
      %v839 = vsel %vm327, 1, 0
      %v840 = vsel %vm328, 1, 0
      %v841 = vsel %vm329, 1, 0
      %v842 = vsel %vm330, 1, 0
      %v843 = vsel %vm331, 1, 0
      %v844 = vsel %vm332, 1, 0
      %v845 = vsel %vm333, 1, 0
      %v846 = vsel %vm334, 1, 0
      %v847 = vsel %vm335, 1, 0
      %v848 = vsel %vm336, 1, 0
      %v849 = vsel %vm337, 1, 0
      %v850 = vsel %vm338, 1, 0
      %v851 = vsel %vm339, 1, 0
      %v852 = vsel %vm340, 1, 0
      %v853 = vsel %vm341, 1, 0
      %v854 = vsel %vm342, 1, 0
      %v855 = vsel %vm343, 1, 0
      %v856 = vsel %vm344, 1, 0
      %v857 = vsel %vm345, 1, 0
      %v858 = vsel %vm346, 1, 0
      %v859 = vsel %vm347, 1, 0
      %v860 = vsel %vm348, 1, 0
      %v861 = vsel %vm349, 1, 0
      %v862 = vsel %vm350, 1, 0
      %v863 = vsel %vm351, 1, 0
      %v864 = vsel %vm352, 1, 0
      %v865 = vsel %vm353, 1, 0
      %v866 = vsel %vm354, 1, 0
      %v867 = vsel %vm355, 1, 0
      %v868 = vsel %vm356, 1, 0
      %v869 = vsel %vm357, 1, 0
      %v870 = vsel %vm358, 1, 0
      %v871 = vsel %vm359, 1, 0
      %v872 = vsel %vm360, 1, 0
      %v873 = vsel %vm361, 1, 0
      %v874 = vsel %vm362, 1, 0
      %v875 = vsel %vm363, 1, 0
      %v876 = vsel %vm364, 1, 0
      %v877 = vsel %vm365, 1, 0
      %v878 = vsel %vm366, 1, 0
      %v879 = vsel %vm367, 1, 0
      %v880 = vsel %vm368, 1, 0
      %v881 = vsel %vm369, 1, 0
      %v882 = vsel %vm370, 1, 0
      %v883 = vsel %vm371, 1, 0
      %v884 = vsel %vm372, 1, 0
      %v885 = vsel %vm373, 1, 0
      %v886 = vsel %vm374, 1, 0
      %v887 = vsel %vm375, 1, 0
      %v888 = vsel %vm376, 1, 0
      %v889 = vsel %vm377, 1, 0
      %v890 = vsel %vm378, 1, 0
      %v891 = vsel %vm379, 1, 0
      %v892 = vsel %vm380, 1, 0
      %v893 = vsel %vm381, 1, 0
      %v894 = vsel %vm382, 1, 0
      %v895 = vsel %vm383, 1, 0
      %v896 = vsel %vm384, 1, 0
      %v897 = vsel %vm385, 1, 0
      %v898 = vsel %vm386, 1, 0
      %v899 = vsel %vm387, 1, 0
      %v900 = vsel %vm388, 1, 0
      %v901 = vsel %vm389, 1, 0
      %v902 = vsel %vm390, 1, 0
      %v903 = vsel %vm391, 1, 0
      %v904 = vsel %vm392, 1, 0
      %v905 = vsel %vm393, 1, 0
      %v906 = vsel %vm394, 1, 0
      %v907 = vsel %vm395, 1, 0
      %v908 = vsel %vm396, 1, 0
      %v909 = vsel %vm397, 1, 0
      %v910 = vsel %vm398, 1, 0
      %v911 = vsel %vm399, 1, 0
      %v912 = vsel %vm400, 1, 0
      %v913 = vsel %vm401, 1, 0
      %v914 = vsel %vm402, 1, 0
      %v915 = vsel %vm403, 1, 0
      %v916 = vsel %vm404, 1, 0
      %v917 = vsel %vm405, 1, 0
      %v918 = vsel %vm406, 1, 0
      %v919 = vsel %vm407, 1, 0
      %v920 = vsel %vm408, 1, 0
      %v921 = vsel %vm409, 1, 0
      %v922 = vsel %vm410, 1, 0
      %v923 = vsel %vm411, 1, 0
      %v924 = vsel %vm412, 1, 0
      %v925 = vsel %vm413, 1, 0
      %v926 = vsel %vm414, 1, 0
      %v927 = vsel %vm415, 1, 0
      %v928 = vsel %vm416, 1, 0
      %v929 = vsel %vm417, 1, 0
      %v930 = vsel %vm418, 1, 0
      %v931 = vsel %vm419, 1, 0
      %v932 = vsel %vm420, 1, 0
      %v933 = vsel %vm421, 1, 0
      %v934 = vsel %vm422, 1, 0
      %v935 = vsel %vm423, 1, 0
      %v936 = vsel %vm424, 1, 0
      %v937 = vsel %vm425, 1, 0
      %v938 = vsel %vm426, 1, 0
      %v939 = vsel %vm427, 1, 0
      %v940 = vsel %vm428, 1, 0
      %v941 = vsel %vm429, 1, 0
      %v942 = vsel %vm430, 1, 0
      %v943 = vsel %vm431, 1, 0
      %v944 = vsel %vm432, 1, 0
      %v945 = vsel %vm433, 1, 0
      %v946 = vsel %vm434, 1, 0
      %v947 = vsel %vm435, 1, 0
      %v948 = vsel %vm436, 1, 0
      %v949 = vsel %vm437, 1, 0
      %v950 = vsel %vm438, 1, 0
      %v951 = vsel %vm439, 1, 0
      %v952 = vsel %vm440, 1, 0
      %v953 = vsel %vm441, 1, 0
      %v954 = vsel %vm442, 1, 0
      %v955 = vsel %vm443, 1, 0
      %v956 = vsel %vm444, 1, 0
      %v957 = vsel %vm445, 1, 0
      %v958 = vsel %vm446, 1, 0
      %v959 = vsel %vm447, 1, 0
      %v960 = vsel %vm448, 1, 0
      %v961 = vsel %vm449, 1, 0
      %v962 = vsel %vm450, 1, 0
      %v963 = vsel %vm451, 1, 0
      %v964 = vsel %vm452, 1, 0
      %v965 = vsel %vm453, 1, 0
      %v966 = vsel %vm454, 1, 0
      %v967 = vsel %vm455, 1, 0
      %v968 = vsel %vm456, 1, 0
      %v969 = vsel %vm457, 1, 0
      %v970 = vsel %vm458, 1, 0
      %v971 = vsel %vm459, 1, 0
      %v972 = vsel %vm460, 1, 0
      %v973 = vsel %vm461, 1, 0
      %v974 = vsel %vm462, 1, 0
      %v975 = vsel %vm463, 1, 0
      %v976 = vsel %vm464, 1, 0
      %v977 = vsel %vm465, 1, 0
      %v978 = vsel %vm466, 1, 0
      %v979 = vsel %vm467, 1, 0
      %v980 = vsel %vm468, 1, 0
      %v981 = vsel %vm469, 1, 0
      %v982 = vsel %vm470, 1, 0
      %v983 = vsel %vm471, 1, 0
      %v984 = vsel %vm472, 1, 0
      %v985 = vsel %vm473, 1, 0
      %v986 = vsel %vm474, 1, 0
      %v987 = vsel %vm475, 1, 0
      %v988 = vsel %vm476, 1, 0
      %v989 = vsel %vm477, 1, 0
      %v990 = vsel %vm478, 1, 0
      %v991 = vsel %vm479, 1, 0
      %v992 = vsel %vm480, 1, 0
      %v993 = vsel %vm481, 1, 0
      %v994 = vsel %vm482, 1, 0
      %v995 = vsel %vm483, 1, 0
      %v996 = vsel %vm484, 1, 0
      %v997 = vsel %vm485, 1, 0
      %v998 = vsel %vm486, 1, 0
      %v999 = vsel %vm487, 1, 0
      %v1000 = vsel %vm488, 1, 0
      %v1001 = vsel %vm489, 1, 0
      %v1002 = vsel %vm490, 1, 0
      %v1003 = vsel %vm491, 1, 0
      %v1004 = vsel %vm492, 1, 0
      %v1005 = vsel %vm493, 1, 0
      %v1006 = vsel %vm494, 1, 0
      %v1007 = vsel %vm495, 1, 0
      %v1008 = vsel %vm496, 1, 0
      %v1009 = vsel %vm497, 1, 0
      %v1010 = vsel %vm498, 1, 0
      %v1011 = vsel %vm499, 1, 0
      %v1012 = vsel %vm500, 1, 0
      %v1013 = vsel %vm501, 1, 0
      %v1014 = vsel %vm502, 1, 0
      %v1015 = vsel %vm503, 1, 0
      %v1016 = vsel %vm504, 1, 0
      %v1017 = vsel %vm505, 1, 0
      %v1018 = vsel %vm506, 1, 0
      %v1019 = vsel %vm507, 1, 0
      %v1020 = vsel %vm508, 1, 0
      %v1021 = vsel %vm509, 1, 0
      %v1022 = vsel %vm510, 1, 0
      %v1023 = vsel %vm511, 1, 0
      %v1024 = vsel %vm512, 1, 0
      %v1025 = vsel %vm513, 1, 0
      %v1026 = vsel %vm514, 1, 0
      %v1027 = vsel %vm515, 1, 0
      %v1028 = vsel %vm516, 1, 0
      %v1029 = vsel %vm517, 1, 0
      %v1030 = vsel %vm518, 1, 0
      %v1031 = vsel %vm519, 1, 0
      %v1032 = vsel %vm520, 1, 0
      %v1033 = vsel %vm521, 1, 0
      %v1034 = vsel %vm522, 1, 0
      %v1035 = vsel %vm523, 1, 0
      %v1036 = vsel %vm524, 1, 0
      %v1037 = vsel %vm525, 1, 0
      %v1038 = vsel %vm526, 1, 0
      %v1039 = vsel %vm527, 1, 0
      %v1040 = vsel %vm528, 1, 0
      %v1041 = vsel %vm529, 1, 0
      %v1042 = vsel %vm530, 1, 0
      %v1043 = vsel %vm531, 1, 0
      %v1044 = vsel %vm532, 1, 0
      %v1045 = vsel %vm533, 1, 0
      %v1046 = vsel %vm534, 1, 0
      %v1047 = vsel %vm535, 1, 0
      %v1048 = vsel %vm536, 1, 0
      %v1049 = vsel %vm537, 1, 0
      %v1050 = vsel %vm538, 1, 0
      %v1051 = vsel %vm539, 1, 0
      %v1052 = vsel %vm540, 1, 0
      %v1053 = vsel %vm541, 1, 0
      %v1054 = vsel %vm542, 1, 0
      %v1055 = vsel %vm543, 1, 0
      %v1056 = vsel %vm544, 1, 0
      %v1057 = vsel %vm545, 1, 0
      %v1058 = vsel %vm546, 1, 0
      %v1059 = vsel %vm547, 1, 0
      %v1060 = vsel %vm548, 1, 0
      %v1061 = vsel %vm549, 1, 0
      %v1062 = vsel %vm550, 1, 0
      %v1063 = vsel %vm551, 1, 0
      %v1064 = vsel %vm552, 1, 0
      %v1065 = vsel %vm553, 1, 0
      %v1066 = vsel %vm554, 1, 0
      %v1067 = vsel %vm555, 1, 0
      %v1068 = vsel %vm556, 1, 0
      %v1069 = vsel %vm557, 1, 0
      %v1070 = vsel %vm558, 1, 0
      %v1071 = vsel %vm559, 1, 0
      %v1072 = vsel %vm560, 1, 0
      %v1073 = vsel %vm561, 1, 0
      %v1074 = vsel %vm562, 1, 0
      %v1075 = vsel %vm563, 1, 0
      %v1076 = vsel %vm564, 1, 0
      %v1077 = vsel %vm565, 1, 0
      %v1078 = vsel %vm566, 1, 0
      %v1079 = vsel %vm567, 1, 0
      %v1080 = vsel %vm568, 1, 0
      %v1081 = vsel %vm569, 1, 0
      %v1082 = vsel %vm570, 1, 0
      %v1083 = vsel %vm571, 1, 0
      %v1084 = vsel %vm572, 1, 0
      %v1085 = vsel %vm573, 1, 0
      %v1086 = vsel %vm574, 1, 0
      %v1087 = vsel %vm575, 1, 0
      %v1088 = vsel %vm576, 1, 0
      %v1089 = vsel %vm577, 1, 0
      %v1090 = vsel %vm578, 1, 0
      %v1091 = vsel %vm579, 1, 0
      %v1092 = vsel %vm580, 1, 0
      %v1093 = vsel %vm581, 1, 0
      %v1094 = vsel %vm582, 1, 0
      %v1095 = vsel %vm583, 1, 0
      %v1096 = vsel %vm584, 1, 0
      %v1097 = vsel %vm585, 1, 0
      %v1098 = vsel %vm586, 1, 0
      %v1099 = vsel %vm587, 1, 0
      %v1100 = vsel %vm588, 1, 0
      %v1101 = vsel %vm589, 1, 0
      %v1102 = vsel %vm590, 1, 0
      %v1103 = vsel %vm591, 1, 0
      %v1104 = vsel %vm592, 1, 0
      %v1105 = vsel %vm593, 1, 0
      %v1106 = vsel %vm594, 1, 0
      %v1107 = vsel %vm595, 1, 0
      %v1108 = vsel %vm596, 1, 0
      %v1109 = vsel %vm597, 1, 0
      %v1110 = vsel %vm598, 1, 0
      %v1111 = vsel %vm599, 1, 0
      %v1112 = vsel %vm600, 1, 0
      %v1113 = vsel %vm601, 1, 0
      %v1114 = vsel %vm602, 1, 0
      %v1115 = vsel %vm603, 1, 0
      %v1116 = vsel %vm604, 1, 0
      %v1117 = vsel %vm605, 1, 0
      %v1118 = vsel %vm606, 1, 0
      %v1119 = vsel %vm607, 1, 0
      %v1120 = vsel %vm608, 1, 0
      %v1121 = vsel %vm609, 1, 0
      %v1122 = vsel %vm610, 1, 0
      %v1123 = vsel %vm611, 1, 0
      %v1124 = vsel %vm612, 1, 0
      %v1125 = vsel %vm613, 1, 0
      %v1126 = vsel %vm614, 1, 0
      %v1127 = vsel %vm615, 1, 0
      %v1128 = vsel %vm616, 1, 0
      %v1129 = vsel %vm617, 1, 0
      %v1130 = vsel %vm618, 1, 0
      %v1131 = vsel %vm619, 1, 0
      %v1132 = vsel %vm620, 1, 0
      %v1133 = vsel %vm621, 1, 0
      %v1134 = vsel %vm622, 1, 0
      %v1135 = vsel %vm623, 1, 0
      %v1136 = vsel %vm624, 1, 0
      %v1137 = vsel %vm625, 1, 0
      %v1138 = vsel %vm626, 1, 0
      %v1139 = vsel %vm627, 1, 0
      %v1140 = vsel %vm628, 1, 0
      %v1141 = vsel %vm629, 1, 0
      %v1142 = vsel %vm630, 1, 0
      %v1143 = vsel %vm631, 1, 0
      %v1144 = vsel %vm632, 1, 0
      %v1145 = vsel %vm633, 1, 0
      %v1146 = vsel %vm634, 1, 0
      %v1147 = vsel %vm635, 1, 0
      %v1148 = vsel %vm636, 1, 0
      %v1149 = vsel %vm637, 1, 0
      %v1150 = vsel %vm638, 1, 0
      %v1151 = vsel %vm639, 1, 0
      %v1152 = vsel %vm640, 1, 0
      %v1153 = vsel %vm641, 1, 0
      %v1154 = vsel %vm642, 1, 0
      %v1155 = vsel %vm643, 1, 0
      %v1156 = vsel %vm644, 1, 0
      %v1157 = vsel %vm645, 1, 0
      %v1158 = vsel %vm646, 1, 0
      %v1159 = vsel %vm647, 1, 0
      %v1160 = vsel %vm648, 1, 0
      %v1161 = vsel %vm649, 1, 0
      %v1162 = vsel %vm650, 1, 0
      %v1163 = vsel %vm651, 1, 0
      %v1164 = vsel %vm652, 1, 0
      %v1165 = vsel %vm653, 1, 0
      %v1166 = vsel %vm654, 1, 0
      %v1167 = vsel %vm655, 1, 0
      %v1168 = vsel %vm656, 1, 0
      %v1169 = vsel %vm657, 1, 0
      %v1170 = vsel %vm658, 1, 0
      %v1171 = vsel %vm659, 1, 0
      %v1172 = vsel %vm660, 1, 0
      %v1173 = vsel %vm661, 1, 0
      %v1174 = vsel %vm662, 1, 0
      %v1175 = vsel %vm663, 1, 0
      %v1176 = vsel %vm664, 1, 0
      %v1177 = vsel %vm665, 1, 0
      %v1178 = vsel %vm666, 1, 0
      %v1179 = vsel %vm667, 1, 0
      %v1180 = vsel %vm668, 1, 0
      %v1181 = vsel %vm669, 1, 0
      %v1182 = vsel %vm670, 1, 0
      %v1183 = vsel %vm671, 1, 0
      %v1184 = vsel %vm672, 1, 0
      %v1185 = vsel %vm673, 1, 0
      %v1186 = vsel %vm674, 1, 0
      %v1187 = vsel %vm675, 1, 0
      %v1188 = vsel %vm676, 1, 0
      %v1189 = vsel %vm677, 1, 0
      %v1190 = vsel %vm678, 1, 0
      %v1191 = vsel %vm679, 1, 0
      %v1192 = vsel %vm680, 1, 0
      %v1193 = vsel %vm681, 1, 0
      %v1194 = vsel %vm682, 1, 0
      %v1195 = vsel %vm683, 1, 0
      %v1196 = vsel %vm684, 1, 0
      %v1197 = vsel %vm685, 1, 0
      %v1198 = vsel %vm686, 1, 0
      %v1199 = vsel %vm687, 1, 0
      %v1200 = vsel %vm688, 1, 0
      %v1201 = vsel %vm689, 1, 0
      %v1202 = vsel %vm690, 1, 0
      %v1203 = vsel %vm691, 1, 0
      %v1204 = vsel %vm692, 1, 0
      %v1205 = vsel %vm693, 1, 0
      %v1206 = vsel %vm694, 1, 0
      %v1207 = vsel %vm695, 1, 0
      %v1208 = vsel %vm696, 1, 0
      %v1209 = vsel %vm697, 1, 0
      %v1210 = vsel %vm698, 1, 0
      %v1211 = vsel %vm699, 1, 0
      %v1212 = vsel %vm700, 1, 0
      %v1213 = vsel %vm701, 1, 0
      %v1214 = vsel %vm702, 1, 0
      %v1215 = vsel %vm703, 1, 0
      %v1216 = vsel %vm704, 1, 0
      %v1217 = vsel %vm705, 1, 0
      %v1218 = vsel %vm706, 1, 0
      %v1219 = vsel %vm707, 1, 0
      %v1220 = vsel %vm708, 1, 0
      %v1221 = vsel %vm709, 1, 0
      %v1222 = vsel %vm710, 1, 0
      %v1223 = vsel %vm711, 1, 0
      %v1224 = vsel %vm712, 1, 0
      %v1225 = vsel %vm713, 1, 0
      %v1226 = vsel %vm714, 1, 0
      %v1227 = vsel %vm715, 1, 0
      %v1228 = vsel %vm716, 1, 0
      %v1229 = vsel %vm717, 1, 0
      %v1230 = vsel %vm718, 1, 0
      %v1231 = vsel %vm719, 1, 0
      %v1232 = vsel %vm720, 1, 0
      %v1233 = vsel %vm721, 1, 0
      %v1234 = vsel %vm722, 1, 0
      %v1235 = vsel %vm723, 1, 0
      %v1236 = vsel %vm724, 1, 0
      %v1237 = vsel %vm725, 1, 0
      %v1238 = vsel %vm726, 1, 0
      %v1239 = vsel %vm727, 1, 0
      %v1240 = vsel %vm728, 1, 0
      %v1241 = vsel %vm729, 1, 0
      %v1242 = vsel %vm730, 1, 0
      %v1243 = vsel %vm731, 1, 0
      %v1244 = vsel %vm732, 1, 0
      %v1245 = vsel %vm733, 1, 0
      %v1246 = vsel %vm734, 1, 0
      %v1247 = vsel %vm735, 1, 0
      %v1248 = vsel %vm736, 1, 0
      %v1249 = vsel %vm737, 1, 0
      %v1250 = vsel %vm738, 1, 0
      %v1251 = vsel %vm739, 1, 0
      %v1252 = vsel %vm740, 1, 0
      %v1253 = vsel %vm741, 1, 0
      %v1254 = vsel %vm742, 1, 0
      %v1255 = vsel %vm743, 1, 0
      %v1256 = vsel %vm744, 1, 0
      %v1257 = vsel %vm745, 1, 0
      %v1258 = vsel %vm746, 1, 0
      %v1259 = vsel %vm747, 1, 0
      %v1260 = vsel %vm748, 1, 0
      %v1261 = vsel %vm749, 1, 0
      %v1262 = vsel %vm750, 1, 0
      %v1263 = vsel %vm751, 1, 0
      %v1264 = vsel %vm752, 1, 0
      %v1265 = vsel %vm753, 1, 0
      %v1266 = vsel %vm754, 1, 0
      %v1267 = vsel %vm755, 1, 0
      %v1268 = vsel %vm756, 1, 0
      %v1269 = vsel %vm757, 1, 0
      %v1270 = vsel %vm758, 1, 0
      %v1271 = vsel %vm759, 1, 0
      %v1272 = vsel %vm760, 1, 0
      %v1273 = vsel %vm761, 1, 0
      %v1274 = vsel %vm762, 1, 0
      %v1275 = vsel %vm763, 1, 0
      %v1276 = vsel %vm764, 1, 0
      %v1277 = vsel %vm765, 1, 0
      %v1278 = vsel %vm766, 1, 0
      %v1279 = vsel %vm767, 1, 0
      %v1280 = vsel %vm768, 1, 0
      %v1281 = vsel %vm769, 1, 0
      %v1282 = vsel %vm770, 1, 0
      %v1283 = vsel %vm771, 1, 0
      %v1284 = vsel %vm772, 1, 0
      %v1285 = vsel %vm773, 1, 0
      %v1286 = vsel %vm774, 1, 0
      %v1287 = vsel %vm775, 1, 0
      %v1288 = vsel %vm776, 1, 0
      %v1289 = vsel %vm777, 1, 0
      %v1290 = vsel %vm778, 1, 0
      %v1291 = vsel %vm779, 1, 0
      %v1292 = vsel %vm780, 1, 0
      %v1293 = vsel %vm781, 1, 0
      %v1294 = vsel %vm782, 1, 0
      %v1295 = vsel %vm783, 1, 0
      %v1296 = vsel %vm784, 1, 0
      %v1297 = vsel %vm785, 1, 0
      %v1298 = vsel %vm786, 1, 0
      %v1299 = vsel %vm787, 1, 0
      %v1300 = vsel %vm788, 1, 0
      %v1301 = vsel %vm789, 1, 0
      %v1302 = vsel %vm790, 1, 0
      %v1303 = vsel %vm791, 1, 0
      %v1304 = vsel %vm792, 1, 0
      %v1305 = vsel %vm793, 1, 0
      %v1306 = vsel %vm794, 1, 0
      %v1307 = vsel %vm795, 1, 0
      %v1308 = vsel %vm796, 1, 0
      %v1309 = vsel %vm797, 1, 0
      %v1310 = vsel %vm798, 1, 0
      %v1311 = vsel %vm799, 1, 0
      %v1312 = vsel %vm800, 1, 0
      %v1313 = vsel %vm801, 1, 0
      %v1314 = vsel %vm802, 1, 0
      %v1315 = vsel %vm803, 1, 0
      %v1316 = vsel %vm804, 1, 0
      %v1317 = vsel %vm805, 1, 0
      %v1318 = vcvt.s32.f32 %v806
      %v1319 = vcvt.s32.f32 %v807
      %v1320 = vcvt.s32.f32 %v808
      %v1321 = vcvt.s32.f32 %v809
      %v1322 = vcvt.s32.f32 %v810
      %v1323 = vcvt.s32.f32 %v811
      %v1324 = vcvt.s32.f32 %v812
      %v1325 = vcvt.s32.f32 %v813
      %v1326 = vcvt.s32.f32 %v814
      %v1327 = vcvt.s32.f32 %v815
      %v1328 = vcvt.s32.f32 %v816
      %v1329 = vcvt.s32.f32 %v817
      %v1330 = vcvt.s32.f32 %v818
      %v1331 = vcvt.s32.f32 %v819
      %v1332 = vcvt.s32.f32 %v820
      %v1333 = vcvt.s32.f32 %v821
      %v1334 = vcvt.s32.f32 %v822
      %v1335 = vcvt.s32.f32 %v823
      %v1336 = vcvt.s32.f32 %v824
      %v1337 = vcvt.s32.f32 %v825
      %v1338 = vcvt.s32.f32 %v826
      %v1339 = vcvt.s32.f32 %v827
      %v1340 = vcvt.s32.f32 %v828
      %v1341 = vcvt.s32.f32 %v829
      %v1342 = vcvt.s32.f32 %v830
      %v1343 = vcvt.s32.f32 %v831
      %v1344 = vcvt.s32.f32 %v832
      %v1345 = vcvt.s32.f32 %v833
      %v1346 = vcvt.s32.f32 %v834
      %v1347 = vcvt.s32.f32 %v835
      %v1348 = vcvt.s32.f32 %v836
      %v1349 = vcvt.s32.f32 %v837
      %v1350 = vcvt.s32.f32 %v838
      %v1351 = vcvt.s32.f32 %v839
      %v1352 = vcvt.s32.f32 %v840
      %v1353 = vcvt.s32.f32 %v841
      %v1354 = vcvt.s32.f32 %v842
      %v1355 = vcvt.s32.f32 %v843
      %v1356 = vcvt.s32.f32 %v844
      %v1357 = vcvt.s32.f32 %v845
      %v1358 = vcvt.s32.f32 %v846
      %v1359 = vcvt.s32.f32 %v847
      %v1360 = vcvt.s32.f32 %v848
      %v1361 = vcvt.s32.f32 %v849
      %v1362 = vcvt.s32.f32 %v850
      %v1363 = vcvt.s32.f32 %v851
      %v1364 = vcvt.s32.f32 %v852
      %v1365 = vcvt.s32.f32 %v853
      %v1366 = vcvt.s32.f32 %v854
      %v1367 = vcvt.s32.f32 %v855
      %v1368 = vcvt.s32.f32 %v856
      %v1369 = vcvt.s32.f32 %v857
      %v1370 = vcvt.s32.f32 %v858
      %v1371 = vcvt.s32.f32 %v859
      %v1372 = vcvt.s32.f32 %v860
      %v1373 = vcvt.s32.f32 %v861
      %v1374 = vcvt.s32.f32 %v862
      %v1375 = vcvt.s32.f32 %v863
      %v1376 = vcvt.s32.f32 %v864
      %v1377 = vcvt.s32.f32 %v865
      %v1378 = vcvt.s32.f32 %v866
      %v1379 = vcvt.s32.f32 %v867
      %v1380 = vcvt.s32.f32 %v868
      %v1381 = vcvt.s32.f32 %v869
      %v1382 = vcvt.s32.f32 %v870
      %v1383 = vcvt.s32.f32 %v871
      %v1384 = vcvt.s32.f32 %v872
      %v1385 = vcvt.s32.f32 %v873
      %v1386 = vcvt.s32.f32 %v874
      %v1387 = vcvt.s32.f32 %v875
      %v1388 = vcvt.s32.f32 %v876
      %v1389 = vcvt.s32.f32 %v877
      %v1390 = vcvt.s32.f32 %v878
      %v1391 = vcvt.s32.f32 %v879
      %v1392 = vcvt.s32.f32 %v880
      %v1393 = vcvt.s32.f32 %v881
      %v1394 = vcvt.s32.f32 %v882
      %v1395 = vcvt.s32.f32 %v883
      %v1396 = vcvt.s32.f32 %v884
      %v1397 = vcvt.s32.f32 %v885
      %v1398 = vcvt.s32.f32 %v886
      %v1399 = vcvt.s32.f32 %v887
      %v1400 = vcvt.s32.f32 %v888
      %v1401 = vcvt.s32.f32 %v889
      %v1402 = vcvt.s32.f32 %v890
      %v1403 = vcvt.s32.f32 %v891
      %v1404 = vcvt.s32.f32 %v892
      %v1405 = vcvt.s32.f32 %v893
      %v1406 = vcvt.s32.f32 %v894
      %v1407 = vcvt.s32.f32 %v895
      %v1408 = vcvt.s32.f32 %v896
      %v1409 = vcvt.s32.f32 %v897
      %v1410 = vcvt.s32.f32 %v898
      %v1411 = vcvt.s32.f32 %v899
      %v1412 = vcvt.s32.f32 %v900
      %v1413 = vcvt.s32.f32 %v901
      %v1414 = vcvt.s32.f32 %v902
      %v1415 = vcvt.s32.f32 %v903
      %v1416 = vcvt.s32.f32 %v904
      %v1417 = vcvt.s32.f32 %v905
      %v1418 = vcvt.s32.f32 %v906
      %v1419 = vcvt.s32.f32 %v907
      %v1420 = vcvt.s32.f32 %v908
      %v1421 = vcvt.s32.f32 %v909
      %v1422 = vcvt.s32.f32 %v910
      %v1423 = vcvt.s32.f32 %v911
      %v1424 = vcvt.s32.f32 %v912
      %v1425 = vcvt.s32.f32 %v913
      %v1426 = vcvt.s32.f32 %v914
      %v1427 = vcvt.s32.f32 %v915
      %v1428 = vcvt.s32.f32 %v916
      %v1429 = vcvt.s32.f32 %v917
      %v1430 = vcvt.s32.f32 %v918
      %v1431 = vcvt.s32.f32 %v919
      %v1432 = vcvt.s32.f32 %v920
      %v1433 = vcvt.s32.f32 %v921
      %v1434 = vcvt.s32.f32 %v922
      %v1435 = vcvt.s32.f32 %v923
      %v1436 = vcvt.s32.f32 %v924
      %v1437 = vcvt.s32.f32 %v925
      %v1438 = vcvt.s32.f32 %v926
      %v1439 = vcvt.s32.f32 %v927
      %v1440 = vcvt.s32.f32 %v928
      %v1441 = vcvt.s32.f32 %v929
      %v1442 = vcvt.s32.f32 %v930
      %v1443 = vcvt.s32.f32 %v931
      %v1444 = vcvt.s32.f32 %v932
      %v1445 = vcvt.s32.f32 %v933
      %v1446 = vcvt.s32.f32 %v934
      %v1447 = vcvt.s32.f32 %v935
      %v1448 = vcvt.s32.f32 %v936
      %v1449 = vcvt.s32.f32 %v937
      %v1450 = vcvt.s32.f32 %v938
      %v1451 = vcvt.s32.f32 %v939
      %v1452 = vcvt.s32.f32 %v940
      %v1453 = vcvt.s32.f32 %v941
      %v1454 = vcvt.s32.f32 %v942
      %v1455 = vcvt.s32.f32 %v943
      %v1456 = vcvt.s32.f32 %v944
      %v1457 = vcvt.s32.f32 %v945
      %v1458 = vcvt.s32.f32 %v946
      %v1459 = vcvt.s32.f32 %v947
      %v1460 = vcvt.s32.f32 %v948
      %v1461 = vcvt.s32.f32 %v949
      %v1462 = vcvt.s32.f32 %v950
      %v1463 = vcvt.s32.f32 %v951
      %v1464 = vcvt.s32.f32 %v952
      %v1465 = vcvt.s32.f32 %v953
      %v1466 = vcvt.s32.f32 %v954
      %v1467 = vcvt.s32.f32 %v955
      %v1468 = vcvt.s32.f32 %v956
      %v1469 = vcvt.s32.f32 %v957
      %v1470 = vcvt.s32.f32 %v958
      %v1471 = vcvt.s32.f32 %v959
      %v1472 = vcvt.s32.f32 %v960
      %v1473 = vcvt.s32.f32 %v961
      %v1474 = vcvt.s32.f32 %v962
      %v1475 = vcvt.s32.f32 %v963
      %v1476 = vcvt.s32.f32 %v964
      %v1477 = vcvt.s32.f32 %v965
      %v1478 = vcvt.s32.f32 %v966
      %v1479 = vcvt.s32.f32 %v967
      %v1480 = vcvt.s32.f32 %v968
      %v1481 = vcvt.s32.f32 %v969
      %v1482 = vcvt.s32.f32 %v970
      %v1483 = vcvt.s32.f32 %v971
      %v1484 = vcvt.s32.f32 %v972
      %v1485 = vcvt.s32.f32 %v973
      %v1486 = vcvt.s32.f32 %v974
      %v1487 = vcvt.s32.f32 %v975
      %v1488 = vcvt.s32.f32 %v976
      %v1489 = vcvt.s32.f32 %v977
      %v1490 = vcvt.s32.f32 %v978
      %v1491 = vcvt.s32.f32 %v979
      %v1492 = vcvt.s32.f32 %v980
      %v1493 = vcvt.s32.f32 %v981
      %v1494 = vcvt.s32.f32 %v982
      %v1495 = vcvt.s32.f32 %v983
      %v1496 = vcvt.s32.f32 %v984
      %v1497 = vcvt.s32.f32 %v985
      %v1498 = vcvt.s32.f32 %v986
      %v1499 = vcvt.s32.f32 %v987
      %v1500 = vcvt.s32.f32 %v988
      %v1501 = vcvt.s32.f32 %v989
      %v1502 = vcvt.s32.f32 %v990
      %v1503 = vcvt.s32.f32 %v991
      %v1504 = vcvt.s32.f32 %v992
      %v1505 = vcvt.s32.f32 %v993
      %v1506 = vcvt.s32.f32 %v994
      %v1507 = vcvt.s32.f32 %v995
      %v1508 = vcvt.s32.f32 %v996
      %v1509 = vcvt.s32.f32 %v997
      %v1510 = vcvt.s32.f32 %v998
      %v1511 = vcvt.s32.f32 %v999
      %v1512 = vcvt.s32.f32 %v1000
      %v1513 = vcvt.s32.f32 %v1001
      %v1514 = vcvt.s32.f32 %v1002
      %v1515 = vcvt.s32.f32 %v1003
      %v1516 = vcvt.s32.f32 %v1004
      %v1517 = vcvt.s32.f32 %v1005
      %v1518 = vcvt.s32.f32 %v1006
      %v1519 = vcvt.s32.f32 %v1007
      %v1520 = vcvt.s32.f32 %v1008
      %v1521 = vcvt.s32.f32 %v1009
      %v1522 = vcvt.s32.f32 %v1010
      %v1523 = vcvt.s32.f32 %v1011
      %v1524 = vcvt.s32.f32 %v1012
      %v1525 = vcvt.s32.f32 %v1013
      %v1526 = vcvt.s32.f32 %v1014
      %v1527 = vcvt.s32.f32 %v1015
      %v1528 = vcvt.s32.f32 %v1016
      %v1529 = vcvt.s32.f32 %v1017
      %v1530 = vcvt.s32.f32 %v1018
      %v1531 = vcvt.s32.f32 %v1019
      %v1532 = vcvt.s32.f32 %v1020
      %v1533 = vcvt.s32.f32 %v1021
      %v1534 = vcvt.s32.f32 %v1022
      %v1535 = vcvt.s32.f32 %v1023
      %v1536 = vcvt.s32.f32 %v1024
      %v1537 = vcvt.s32.f32 %v1025
      %v1538 = vcvt.s32.f32 %v1026
      %v1539 = vcvt.s32.f32 %v1027
      %v1540 = vcvt.s32.f32 %v1028
      %v1541 = vcvt.s32.f32 %v1029
      %v1542 = vcvt.s32.f32 %v1030
      %v1543 = vcvt.s32.f32 %v1031
      %v1544 = vcvt.s32.f32 %v1032
      %v1545 = vcvt.s32.f32 %v1033
      %v1546 = vcvt.s32.f32 %v1034
      %v1547 = vcvt.s32.f32 %v1035
      %v1548 = vcvt.s32.f32 %v1036
      %v1549 = vcvt.s32.f32 %v1037
      %v1550 = vcvt.s32.f32 %v1038
      %v1551 = vcvt.s32.f32 %v1039
      %v1552 = vcvt.s32.f32 %v1040
      %v1553 = vcvt.s32.f32 %v1041
      %v1554 = vcvt.s32.f32 %v1042
      %v1555 = vcvt.s32.f32 %v1043
      %v1556 = vcvt.s32.f32 %v1044
      %v1557 = vcvt.s32.f32 %v1045
      %v1558 = vcvt.s32.f32 %v1046
      %v1559 = vcvt.s32.f32 %v1047
      %v1560 = vcvt.s32.f32 %v1048
      %v1561 = vcvt.s32.f32 %v1049
      %v1562 = vcvt.s32.f32 %v1050
      %v1563 = vcvt.s32.f32 %v1051
      %v1564 = vcvt.s32.f32 %v1052
      %v1565 = vcvt.s32.f32 %v1053
      %v1566 = vcvt.s32.f32 %v1054
      %v1567 = vcvt.s32.f32 %v1055
      %v1568 = vcvt.s32.f32 %v1056
      %v1569 = vcvt.s32.f32 %v1057
      %v1570 = vcvt.s32.f32 %v1058
      %v1571 = vcvt.s32.f32 %v1059
      %v1572 = vcvt.s32.f32 %v1060
      %v1573 = vcvt.s32.f32 %v1061
      %v1574 = vcvt.s32.f32 %v1062
      %v1575 = vcvt.s32.f32 %v1063
      %v1576 = vcvt.s32.f32 %v1064
      %v1577 = vcvt.s32.f32 %v1065
      %v1578 = vcvt.s32.f32 %v1066
      %v1579 = vcvt.s32.f32 %v1067
      %v1580 = vcvt.s32.f32 %v1068
      %v1581 = vcvt.s32.f32 %v1069
      %v1582 = vcvt.s32.f32 %v1070
      %v1583 = vcvt.s32.f32 %v1071
      %v1584 = vcvt.s32.f32 %v1072
      %v1585 = vcvt.s32.f32 %v1073
      %v1586 = vcvt.s32.f32 %v1074
      %v1587 = vcvt.s32.f32 %v1075
      %v1588 = vcvt.s32.f32 %v1076
      %v1589 = vcvt.s32.f32 %v1077
      %v1590 = vcvt.s32.f32 %v1078
      %v1591 = vcvt.s32.f32 %v1079
      %v1592 = vcvt.s32.f32 %v1080
      %v1593 = vcvt.s32.f32 %v1081
      %v1594 = vcvt.s32.f32 %v1082
      %v1595 = vcvt.s32.f32 %v1083
      %v1596 = vcvt.s32.f32 %v1084
      %v1597 = vcvt.s32.f32 %v1085
      %v1598 = vcvt.s32.f32 %v1086
      %v1599 = vcvt.s32.f32 %v1087
      %v1600 = vcvt.s32.f32 %v1088
      %v1601 = vcvt.s32.f32 %v1089
      %v1602 = vcvt.s32.f32 %v1090
      %v1603 = vcvt.s32.f32 %v1091
      %v1604 = vcvt.s32.f32 %v1092
      %v1605 = vcvt.s32.f32 %v1093
      %v1606 = vcvt.s32.f32 %v1094
      %v1607 = vcvt.s32.f32 %v1095
      %v1608 = vcvt.s32.f32 %v1096
      %v1609 = vcvt.s32.f32 %v1097
      %v1610 = vcvt.s32.f32 %v1098
      %v1611 = vcvt.s32.f32 %v1099
      %v1612 = vcvt.s32.f32 %v1100
      %v1613 = vcvt.s32.f32 %v1101
      %v1614 = vcvt.s32.f32 %v1102
      %v1615 = vcvt.s32.f32 %v1103
      %v1616 = vcvt.s32.f32 %v1104
      %v1617 = vcvt.s32.f32 %v1105
      %v1618 = vcvt.s32.f32 %v1106
      %v1619 = vcvt.s32.f32 %v1107
      %v1620 = vcvt.s32.f32 %v1108
      %v1621 = vcvt.s32.f32 %v1109
      %v1622 = vcvt.s32.f32 %v1110
      %v1623 = vcvt.s32.f32 %v1111
      %v1624 = vcvt.s32.f32 %v1112
      %v1625 = vcvt.s32.f32 %v1113
      %v1626 = vcvt.s32.f32 %v1114
      %v1627 = vcvt.s32.f32 %v1115
      %v1628 = vcvt.s32.f32 %v1116
      %v1629 = vcvt.s32.f32 %v1117
      %v1630 = vcvt.s32.f32 %v1118
      %v1631 = vcvt.s32.f32 %v1119
      %v1632 = vcvt.s32.f32 %v1120
      %v1633 = vcvt.s32.f32 %v1121
      %v1634 = vcvt.s32.f32 %v1122
      %v1635 = vcvt.s32.f32 %v1123
      %v1636 = vcvt.s32.f32 %v1124
      %v1637 = vcvt.s32.f32 %v1125
      %v1638 = vcvt.s32.f32 %v1126
      %v1639 = vcvt.s32.f32 %v1127
      %v1640 = vcvt.s32.f32 %v1128
      %v1641 = vcvt.s32.f32 %v1129
      %v1642 = vcvt.s32.f32 %v1130
      %v1643 = vcvt.s32.f32 %v1131
      %v1644 = vcvt.s32.f32 %v1132
      %v1645 = vcvt.s32.f32 %v1133
      %v1646 = vcvt.s32.f32 %v1134
      %v1647 = vcvt.s32.f32 %v1135
      %v1648 = vcvt.s32.f32 %v1136
      %v1649 = vcvt.s32.f32 %v1137
      %v1650 = vcvt.s32.f32 %v1138
      %v1651 = vcvt.s32.f32 %v1139
      %v1652 = vcvt.s32.f32 %v1140
      %v1653 = vcvt.s32.f32 %v1141
      %v1654 = vcvt.s32.f32 %v1142
      %v1655 = vcvt.s32.f32 %v1143
      %v1656 = vcvt.s32.f32 %v1144
      %v1657 = vcvt.s32.f32 %v1145
      %v1658 = vcvt.s32.f32 %v1146
      %v1659 = vcvt.s32.f32 %v1147
      %v1660 = vcvt.s32.f32 %v1148
      %v1661 = vcvt.s32.f32 %v1149
      %v1662 = vcvt.s32.f32 %v1150
      %v1663 = vcvt.s32.f32 %v1151
      %v1664 = vcvt.s32.f32 %v1152
      %v1665 = vcvt.s32.f32 %v1153
      %v1666 = vcvt.s32.f32 %v1154
      %v1667 = vcvt.s32.f32 %v1155
      %v1668 = vcvt.s32.f32 %v1156
      %v1669 = vcvt.s32.f32 %v1157
      %v1670 = vcvt.s32.f32 %v1158
      %v1671 = vcvt.s32.f32 %v1159
      %v1672 = vcvt.s32.f32 %v1160
      %v1673 = vcvt.s32.f32 %v1161
      %v1674 = vcvt.s32.f32 %v1162
      %v1675 = vcvt.s32.f32 %v1163
      %v1676 = vcvt.s32.f32 %v1164
      %v1677 = vcvt.s32.f32 %v1165
      %v1678 = vcvt.s32.f32 %v1166
      %v1679 = vcvt.s32.f32 %v1167
      %v1680 = vcvt.s32.f32 %v1168
      %v1681 = vcvt.s32.f32 %v1169
      %v1682 = vcvt.s32.f32 %v1170
      %v1683 = vcvt.s32.f32 %v1171
      %v1684 = vcvt.s32.f32 %v1172
      %v1685 = vcvt.s32.f32 %v1173
      %v1686 = vcvt.s32.f32 %v1174
      %v1687 = vcvt.s32.f32 %v1175
      %v1688 = vcvt.s32.f32 %v1176
      %v1689 = vcvt.s32.f32 %v1177
      %v1690 = vcvt.s32.f32 %v1178
      %v1691 = vcvt.s32.f32 %v1179
      %v1692 = vcvt.s32.f32 %v1180
      %v1693 = vcvt.s32.f32 %v1181
      %v1694 = vcvt.s32.f32 %v1182
      %v1695 = vcvt.s32.f32 %v1183
      %v1696 = vcvt.s32.f32 %v1184
      %v1697 = vcvt.s32.f32 %v1185
      %v1698 = vcvt.s32.f32 %v1186
      %v1699 = vcvt.s32.f32 %v1187
      %v1700 = vcvt.s32.f32 %v1188
      %v1701 = vcvt.s32.f32 %v1189
      %v1702 = vcvt.s32.f32 %v1190
      %v1703 = vcvt.s32.f32 %v1191
      %v1704 = vcvt.s32.f32 %v1192
      %v1705 = vcvt.s32.f32 %v1193
      %v1706 = vcvt.s32.f32 %v1194
      %v1707 = vcvt.s32.f32 %v1195
      %v1708 = vcvt.s32.f32 %v1196
      %v1709 = vcvt.s32.f32 %v1197
      %v1710 = vcvt.s32.f32 %v1198
      %v1711 = vcvt.s32.f32 %v1199
      %v1712 = vcvt.s32.f32 %v1200
      %v1713 = vcvt.s32.f32 %v1201
      %v1714 = vcvt.s32.f32 %v1202
      %v1715 = vcvt.s32.f32 %v1203
      %v1716 = vcvt.s32.f32 %v1204
      %v1717 = vcvt.s32.f32 %v1205
      %v1718 = vcvt.s32.f32 %v1206
      %v1719 = vcvt.s32.f32 %v1207
      %v1720 = vcvt.s32.f32 %v1208
      %v1721 = vcvt.s32.f32 %v1209
      %v1722 = vcvt.s32.f32 %v1210
      %v1723 = vcvt.s32.f32 %v1211
      %v1724 = vcvt.s32.f32 %v1212
      %v1725 = vcvt.s32.f32 %v1213
      %v1726 = vcvt.s32.f32 %v1214
      %v1727 = vcvt.s32.f32 %v1215
      %v1728 = vcvt.s32.f32 %v1216
      %v1729 = vcvt.s32.f32 %v1217
      %v1730 = vcvt.s32.f32 %v1218
      %v1731 = vcvt.s32.f32 %v1219
      %v1732 = vcvt.s32.f32 %v1220
      %v1733 = vcvt.s32.f32 %v1221
      %v1734 = vcvt.s32.f32 %v1222
      %v1735 = vcvt.s32.f32 %v1223
      %v1736 = vcvt.s32.f32 %v1224
      %v1737 = vcvt.s32.f32 %v1225
      %v1738 = vcvt.s32.f32 %v1226
      %v1739 = vcvt.s32.f32 %v1227
      %v1740 = vcvt.s32.f32 %v1228
      %v1741 = vcvt.s32.f32 %v1229
      %v1742 = vcvt.s32.f32 %v1230
      %v1743 = vcvt.s32.f32 %v1231
      %v1744 = vcvt.s32.f32 %v1232
      %v1745 = vcvt.s32.f32 %v1233
      %v1746 = vcvt.s32.f32 %v1234
      %v1747 = vcvt.s32.f32 %v1235
      %v1748 = vcvt.s32.f32 %v1236
      %v1749 = vcvt.s32.f32 %v1237
      %v1750 = vcvt.s32.f32 %v1238
      %v1751 = vcvt.s32.f32 %v1239
      %v1752 = vcvt.s32.f32 %v1240
      %v1753 = vcvt.s32.f32 %v1241
      %v1754 = vcvt.s32.f32 %v1242
      %v1755 = vcvt.s32.f32 %v1243
      %v1756 = vcvt.s32.f32 %v1244
      %v1757 = vcvt.s32.f32 %v1245
      %v1758 = vcvt.s32.f32 %v1246
      %v1759 = vcvt.s32.f32 %v1247
      %v1760 = vcvt.s32.f32 %v1248
      %v1761 = vcvt.s32.f32 %v1249
      %v1762 = vcvt.s32.f32 %v1250
      %v1763 = vcvt.s32.f32 %v1251
      %v1764 = vcvt.s32.f32 %v1252
      %v1765 = vcvt.s32.f32 %v1253
      %v1766 = vcvt.s32.f32 %v1254
      %v1767 = vcvt.s32.f32 %v1255
      %v1768 = vcvt.s32.f32 %v1256
      %v1769 = vcvt.s32.f32 %v1257
      %v1770 = vcvt.s32.f32 %v1258
      %v1771 = vcvt.s32.f32 %v1259
      %v1772 = vcvt.s32.f32 %v1260
      %v1773 = vcvt.s32.f32 %v1261
      %v1774 = vcvt.s32.f32 %v1262
      %v1775 = vcvt.s32.f32 %v1263
      %v1776 = vcvt.s32.f32 %v1264
      %v1777 = vcvt.s32.f32 %v1265
      %v1778 = vcvt.s32.f32 %v1266
      %v1779 = vcvt.s32.f32 %v1267
      %v1780 = vcvt.s32.f32 %v1268
      %v1781 = vcvt.s32.f32 %v1269
      %v1782 = vcvt.s32.f32 %v1270
      %v1783 = vcvt.s32.f32 %v1271
      %v1784 = vcvt.s32.f32 %v1272
      %v1785 = vcvt.s32.f32 %v1273
      %v1786 = vcvt.s32.f32 %v1274
      %v1787 = vcvt.s32.f32 %v1275
      %v1788 = vcvt.s32.f32 %v1276
      %v1789 = vcvt.s32.f32 %v1277
      %v1790 = vcvt.s32.f32 %v1278
      %v1791 = vcvt.s32.f32 %v1279
      %v1792 = vcvt.s32.f32 %v1280
      %v1793 = vcvt.s32.f32 %v1281
      %v1794 = vcvt.s32.f32 %v1282
      %v1795 = vcvt.s32.f32 %v1283
      %v1796 = vcvt.s32.f32 %v1284
      %v1797 = vcvt.s32.f32 %v1285
      %v1798 = vcvt.s32.f32 %v1286
      %v1799 = vcvt.s32.f32 %v1287
      %v1800 = vcvt.s32.f32 %v1288
      %v1801 = vcvt.s32.f32 %v1289
      %v1802 = vcvt.s32.f32 %v1290
      %v1803 = vcvt.s32.f32 %v1291
      %v1804 = vcvt.s32.f32 %v1292
      %v1805 = vcvt.s32.f32 %v1293
      %v1806 = vcvt.s32.f32 %v1294
      %v1807 = vcvt.s32.f32 %v1295
      %v1808 = vcvt.s32.f32 %v1296
      %v1809 = vcvt.s32.f32 %v1297
      %v1810 = vcvt.s32.f32 %v1298
      %v1811 = vcvt.s32.f32 %v1299
      %v1812 = vcvt.s32.f32 %v1300
      %v1813 = vcvt.s32.f32 %v1301
      %v1814 = vcvt.s32.f32 %v1302
      %v1815 = vcvt.s32.f32 %v1303
      %v1816 = vcvt.s32.f32 %v1304
      %v1817 = vcvt.s32.f32 %v1305
      %v1818 = vcvt.s32.f32 %v1306
      %v1819 = vcvt.s32.f32 %v1307
      %v1820 = vcvt.s32.f32 %v1308
      %v1821 = vcvt.s32.f32 %v1309
      %v1822 = vcvt.s32.f32 %v1310
      %v1823 = vcvt.s32.f32 %v1311
      %v1824 = vcvt.s32.f32 %v1312
      %v1825 = vcvt.s32.f32 %v1313
      %v1826 = vcvt.s32.f32 %v1314
      %v1827 = vcvt.s32.f32 %v1315
      %v1828 = vcvt.s32.f32 %v1316
      %v1829 = vcvt.s32.f32 %v1317
      %v1830 = vpack.c.bf16 %v1326, %v1318
      %v1831 = vpack.c.bf16 %v1327, %v1319
      %v1832 = vpack.c.bf16 %v1328, %v1320
      %v1833 = vpack.c.bf16 %v1329, %v1321
      %v1834 = vpack.c.bf16 %v1330, %v1322
      %v1835 = vpack.c.bf16 %v1331, %v1323
      %v1836 = vpack.c.bf16 %v1332, %v1324
      %v1837 = vpack.c.bf16 %v1333, %v1325
      %v1838 = vpack.c.bf16 %v1342, %v1334
      %v1839 = vpack.c.bf16 %v1343, %v1335
      %v1840 = vpack.c.bf16 %v1344, %v1336
      %v1841 = vpack.c.bf16 %v1345, %v1337
      %v1842 = vpack.c.bf16 %v1346, %v1338
      %v1843 = vpack.c.bf16 %v1347, %v1339
      %v1844 = vpack.c.bf16 %v1348, %v1340
      %v1845 = vpack.c.bf16 %v1349, %v1341
      %v1846 = vpack.c.bf16 %v1358, %v1350
      %v1847 = vpack.c.bf16 %v1359, %v1351
      %v1848 = vpack.c.bf16 %v1360, %v1352
      %v1849 = vpack.c.bf16 %v1361, %v1353
      %v1850 = vpack.c.bf16 %v1362, %v1354
      %v1851 = vpack.c.bf16 %v1363, %v1355
      %v1852 = vpack.c.bf16 %v1364, %v1356
      %v1853 = vpack.c.bf16 %v1365, %v1357
      %v1854 = vpack.c.bf16 %v1374, %v1366
      %v1855 = vpack.c.bf16 %v1375, %v1367
      %v1856 = vpack.c.bf16 %v1376, %v1368
      %v1857 = vpack.c.bf16 %v1377, %v1369
      %v1858 = vpack.c.bf16 %v1378, %v1370
      %v1859 = vpack.c.bf16 %v1379, %v1371
      %v1860 = vpack.c.bf16 %v1380, %v1372
      %v1861 = vpack.c.bf16 %v1381, %v1373
      %v1862 = vpack.c.bf16 %v1390, %v1382
      %v1863 = vpack.c.bf16 %v1391, %v1383
      %v1864 = vpack.c.bf16 %v1392, %v1384
      %v1865 = vpack.c.bf16 %v1393, %v1385
      %v1866 = vpack.c.bf16 %v1394, %v1386
      %v1867 = vpack.c.bf16 %v1395, %v1387
      %v1868 = vpack.c.bf16 %v1396, %v1388
      %v1869 = vpack.c.bf16 %v1397, %v1389
      %v1870 = vpack.c.bf16 %v1406, %v1398
      %v1871 = vpack.c.bf16 %v1407, %v1399
      %v1872 = vpack.c.bf16 %v1408, %v1400
      %v1873 = vpack.c.bf16 %v1409, %v1401
      %v1874 = vpack.c.bf16 %v1410, %v1402
      %v1875 = vpack.c.bf16 %v1411, %v1403
      %v1876 = vpack.c.bf16 %v1412, %v1404
      %v1877 = vpack.c.bf16 %v1413, %v1405
      %v1878 = vpack.c.bf16 %v1422, %v1414
      %v1879 = vpack.c.bf16 %v1423, %v1415
      %v1880 = vpack.c.bf16 %v1424, %v1416
      %v1881 = vpack.c.bf16 %v1425, %v1417
      %v1882 = vpack.c.bf16 %v1426, %v1418
      %v1883 = vpack.c.bf16 %v1427, %v1419
      %v1884 = vpack.c.bf16 %v1428, %v1420
      %v1885 = vpack.c.bf16 %v1429, %v1421
      %v1886 = vpack.c.bf16 %v1438, %v1430
      %v1887 = vpack.c.bf16 %v1439, %v1431
      %v1888 = vpack.c.bf16 %v1440, %v1432
      %v1889 = vpack.c.bf16 %v1441, %v1433
      %v1890 = vpack.c.bf16 %v1442, %v1434
      %v1891 = vpack.c.bf16 %v1443, %v1435
      %v1892 = vpack.c.bf16 %v1444, %v1436
      %v1893 = vpack.c.bf16 %v1445, %v1437
      %v1894 = vpack.c.bf16 %v1454, %v1446
      %v1895 = vpack.c.bf16 %v1455, %v1447
      %v1896 = vpack.c.bf16 %v1456, %v1448
      %v1897 = vpack.c.bf16 %v1457, %v1449
      %v1898 = vpack.c.bf16 %v1458, %v1450
      %v1899 = vpack.c.bf16 %v1459, %v1451
      %v1900 = vpack.c.bf16 %v1460, %v1452
      %v1901 = vpack.c.bf16 %v1461, %v1453
      %v1902 = vpack.c.bf16 %v1470, %v1462
      %v1903 = vpack.c.bf16 %v1471, %v1463
      %v1904 = vpack.c.bf16 %v1472, %v1464
      %v1905 = vpack.c.bf16 %v1473, %v1465
      %v1906 = vpack.c.bf16 %v1474, %v1466
      %v1907 = vpack.c.bf16 %v1475, %v1467
      %v1908 = vpack.c.bf16 %v1476, %v1468
      %v1909 = vpack.c.bf16 %v1477, %v1469
      %v1910 = vpack.c.bf16 %v1486, %v1478
      %v1911 = vpack.c.bf16 %v1487, %v1479
      %v1912 = vpack.c.bf16 %v1488, %v1480
      %v1913 = vpack.c.bf16 %v1489, %v1481
      %v1914 = vpack.c.bf16 %v1490, %v1482
      %v1915 = vpack.c.bf16 %v1491, %v1483
      %v1916 = vpack.c.bf16 %v1492, %v1484
      %v1917 = vpack.c.bf16 %v1493, %v1485
      %v1918 = vpack.c.bf16 %v1502, %v1494
      %v1919 = vpack.c.bf16 %v1503, %v1495
      %v1920 = vpack.c.bf16 %v1504, %v1496
      %v1921 = vpack.c.bf16 %v1505, %v1497
      %v1922 = vpack.c.bf16 %v1506, %v1498
      %v1923 = vpack.c.bf16 %v1507, %v1499
      %v1924 = vpack.c.bf16 %v1508, %v1500
      %v1925 = vpack.c.bf16 %v1509, %v1501
      %v1926 = vpack.c.bf16 %v1518, %v1510
      %v1927 = vpack.c.bf16 %v1519, %v1511
      %v1928 = vpack.c.bf16 %v1520, %v1512
      %v1929 = vpack.c.bf16 %v1521, %v1513
      %v1930 = vpack.c.bf16 %v1522, %v1514
      %v1931 = vpack.c.bf16 %v1523, %v1515
      %v1932 = vpack.c.bf16 %v1524, %v1516
      %v1933 = vpack.c.bf16 %v1525, %v1517
      %v1934 = vpack.c.bf16 %v1534, %v1526
      %v1935 = vpack.c.bf16 %v1535, %v1527
      %v1936 = vpack.c.bf16 %v1536, %v1528
      %v1937 = vpack.c.bf16 %v1537, %v1529
      %v1938 = vpack.c.bf16 %v1538, %v1530
      %v1939 = vpack.c.bf16 %v1539, %v1531
      %v1940 = vpack.c.bf16 %v1540, %v1532
      %v1941 = vpack.c.bf16 %v1541, %v1533
      %v1942 = vpack.c.bf16 %v1550, %v1542
      %v1943 = vpack.c.bf16 %v1551, %v1543
      %v1944 = vpack.c.bf16 %v1552, %v1544
      %v1945 = vpack.c.bf16 %v1553, %v1545
      %v1946 = vpack.c.bf16 %v1554, %v1546
      %v1947 = vpack.c.bf16 %v1555, %v1547
      %v1948 = vpack.c.bf16 %v1556, %v1548
      %v1949 = vpack.c.bf16 %v1557, %v1549
      %v1950 = vpack.c.bf16 %v1566, %v1558
      %v1951 = vpack.c.bf16 %v1567, %v1559
      %v1952 = vpack.c.bf16 %v1568, %v1560
      %v1953 = vpack.c.bf16 %v1569, %v1561
      %v1954 = vpack.c.bf16 %v1570, %v1562
      %v1955 = vpack.c.bf16 %v1571, %v1563
      %v1956 = vpack.c.bf16 %v1572, %v1564
      %v1957 = vpack.c.bf16 %v1573, %v1565
      %v1958 = vpack.c.bf16 %v1582, %v1574
      %v1959 = vpack.c.bf16 %v1583, %v1575
      %v1960 = vpack.c.bf16 %v1584, %v1576
      %v1961 = vpack.c.bf16 %v1585, %v1577
      %v1962 = vpack.c.bf16 %v1586, %v1578
      %v1963 = vpack.c.bf16 %v1587, %v1579
      %v1964 = vpack.c.bf16 %v1588, %v1580
      %v1965 = vpack.c.bf16 %v1589, %v1581
      %v1966 = vpack.c.bf16 %v1598, %v1590
      %v1967 = vpack.c.bf16 %v1599, %v1591
      %v1968 = vpack.c.bf16 %v1600, %v1592
      %v1969 = vpack.c.bf16 %v1601, %v1593
      %v1970 = vpack.c.bf16 %v1602, %v1594
      %v1971 = vpack.c.bf16 %v1603, %v1595
      %v1972 = vpack.c.bf16 %v1604, %v1596
      %v1973 = vpack.c.bf16 %v1605, %v1597
      %v1974 = vpack.c.bf16 %v1614, %v1606
      %v1975 = vpack.c.bf16 %v1615, %v1607
      %v1976 = vpack.c.bf16 %v1616, %v1608
      %v1977 = vpack.c.bf16 %v1617, %v1609
      %v1978 = vpack.c.bf16 %v1618, %v1610
      %v1979 = vpack.c.bf16 %v1619, %v1611
      %v1980 = vpack.c.bf16 %v1620, %v1612
      %v1981 = vpack.c.bf16 %v1621, %v1613
      %v1982 = vpack.c.bf16 %v1630, %v1622
      %v1983 = vpack.c.bf16 %v1631, %v1623
      %v1984 = vpack.c.bf16 %v1632, %v1624
      %v1985 = vpack.c.bf16 %v1633, %v1625
      %v1986 = vpack.c.bf16 %v1634, %v1626
      %v1987 = vpack.c.bf16 %v1635, %v1627
      %v1988 = vpack.c.bf16 %v1636, %v1628
      %v1989 = vpack.c.bf16 %v1637, %v1629
      %v1990 = vpack.c.bf16 %v1646, %v1638
      %v1991 = vpack.c.bf16 %v1647, %v1639
      %v1992 = vpack.c.bf16 %v1648, %v1640
      %v1993 = vpack.c.bf16 %v1649, %v1641
      %v1994 = vpack.c.bf16 %v1650, %v1642
      %v1995 = vpack.c.bf16 %v1651, %v1643
      %v1996 = vpack.c.bf16 %v1652, %v1644
      %v1997 = vpack.c.bf16 %v1653, %v1645
      %v1998 = vpack.c.bf16 %v1662, %v1654
      %v1999 = vpack.c.bf16 %v1663, %v1655
      %v2000 = vpack.c.bf16 %v1664, %v1656
      %v2001 = vpack.c.bf16 %v1665, %v1657
      %v2002 = vpack.c.bf16 %v1666, %v1658
      %v2003 = vpack.c.bf16 %v1667, %v1659
      %v2004 = vpack.c.bf16 %v1668, %v1660
      %v2005 = vpack.c.bf16 %v1669, %v1661
      %v2006 = vpack.c.bf16 %v1678, %v1670
      %v2007 = vpack.c.bf16 %v1679, %v1671
      %v2008 = vpack.c.bf16 %v1680, %v1672
      %v2009 = vpack.c.bf16 %v1681, %v1673
      %v2010 = vpack.c.bf16 %v1682, %v1674
      %v2011 = vpack.c.bf16 %v1683, %v1675
      %v2012 = vpack.c.bf16 %v1684, %v1676
      %v2013 = vpack.c.bf16 %v1685, %v1677
      %v2014 = vpack.c.bf16 %v1694, %v1686
      %v2015 = vpack.c.bf16 %v1695, %v1687
      %v2016 = vpack.c.bf16 %v1696, %v1688
      %v2017 = vpack.c.bf16 %v1697, %v1689
      %v2018 = vpack.c.bf16 %v1698, %v1690
      %v2019 = vpack.c.bf16 %v1699, %v1691
      %v2020 = vpack.c.bf16 %v1700, %v1692
      %v2021 = vpack.c.bf16 %v1701, %v1693
      %v2022 = vpack.c.bf16 %v1710, %v1702
      %v2023 = vpack.c.bf16 %v1711, %v1703
      %v2024 = vpack.c.bf16 %v1712, %v1704
      %v2025 = vpack.c.bf16 %v1713, %v1705
      %v2026 = vpack.c.bf16 %v1714, %v1706
      %v2027 = vpack.c.bf16 %v1715, %v1707
      %v2028 = vpack.c.bf16 %v1716, %v1708
      %v2029 = vpack.c.bf16 %v1717, %v1709
      %v2030 = vpack.c.bf16 %v1726, %v1718
      %v2031 = vpack.c.bf16 %v1727, %v1719
      %v2032 = vpack.c.bf16 %v1728, %v1720
      %v2033 = vpack.c.bf16 %v1729, %v1721
      %v2034 = vpack.c.bf16 %v1730, %v1722
      %v2035 = vpack.c.bf16 %v1731, %v1723
      %v2036 = vpack.c.bf16 %v1732, %v1724
      %v2037 = vpack.c.bf16 %v1733, %v1725
      %v2038 = vpack.c.bf16 %v1742, %v1734
      %v2039 = vpack.c.bf16 %v1743, %v1735
      %v2040 = vpack.c.bf16 %v1744, %v1736
      %v2041 = vpack.c.bf16 %v1745, %v1737
      %v2042 = vpack.c.bf16 %v1746, %v1738
      %v2043 = vpack.c.bf16 %v1747, %v1739
      %v2044 = vpack.c.bf16 %v1748, %v1740
      %v2045 = vpack.c.bf16 %v1749, %v1741
      %v2046 = vpack.c.bf16 %v1758, %v1750
      %v2047 = vpack.c.bf16 %v1759, %v1751
      %v2048 = vpack.c.bf16 %v1760, %v1752
      %v2049 = vpack.c.bf16 %v1761, %v1753
      %v2050 = vpack.c.bf16 %v1762, %v1754
      %v2051 = vpack.c.bf16 %v1763, %v1755
      %v2052 = vpack.c.bf16 %v1764, %v1756
      %v2053 = vpack.c.bf16 %v1765, %v1757
      %v2054 = vpack.c.bf16 %v1774, %v1766
      %v2055 = vpack.c.bf16 %v1775, %v1767
      %v2056 = vpack.c.bf16 %v1776, %v1768
      %v2057 = vpack.c.bf16 %v1777, %v1769
      %v2058 = vpack.c.bf16 %v1778, %v1770
      %v2059 = vpack.c.bf16 %v1779, %v1771
      %v2060 = vpack.c.bf16 %v1780, %v1772
      %v2061 = vpack.c.bf16 %v1781, %v1773
      %v2062 = vpack.c.bf16 %v1790, %v1782
      %v2063 = vpack.c.bf16 %v1791, %v1783
      %v2064 = vpack.c.bf16 %v1792, %v1784
      %v2065 = vpack.c.bf16 %v1793, %v1785
      %v2066 = vpack.c.bf16 %v1794, %v1786
      %v2067 = vpack.c.bf16 %v1795, %v1787
      %v2068 = vpack.c.bf16 %v1796, %v1788
      %v2069 = vpack.c.bf16 %v1797, %v1789
      %v2070 = vpack.c.bf16 %v1806, %v1798
      %v2071 = vpack.c.bf16 %v1807, %v1799
      %v2072 = vpack.c.bf16 %v1808, %v1800
      %v2073 = vpack.c.bf16 %v1809, %v1801
      %v2074 = vpack.c.bf16 %v1810, %v1802
      %v2075 = vpack.c.bf16 %v1811, %v1803
      %v2076 = vpack.c.bf16 %v1812, %v1804
      %v2077 = vpack.c.bf16 %v1813, %v1805
      %v2078 = vpack.c.bf16 %v1822, %v1814
      %v2079 = vpack.c.bf16 %v1823, %v1815
      %v2080 = vpack.c.bf16 %v1824, %v1816
      %v2081 = vpack.c.bf16 %v1825, %v1817
      %v2082 = vpack.c.bf16 %v1826, %v1818
      %v2083 = vpack.c.bf16 %v1827, %v1819
      %v2084 = vpack.c.bf16 %v1828, %v1820
      %v2085 = vpack.c.bf16 %v1829, %v1821
      %v2087 = vcombine.high %v195, %v195
      %v2089 = vunpack.c.l.s4 1983009808
      %v2090 = vunpack.c.0.s8 %v2089
      %v2091 = vlaneseq
      %v2092 = vshrl.u32 %v2091, 7
      %v2093 = vsub.s32 %v2090, %v2092
      %v2094 = vrot.slane %v195, %v2093
      %v2096 = vunpack.c.l.s4 1983009808
      %v2097 = vunpack.c.0.s8 %v2096
      %v2098 = vlaneseq
      %v2099 = vshrl.u32 %v2098, 7
      %v2100 = vsub.s32 %v2097, %v2099
      %v2101 = vrot.slane %v2087, %v2100
      %v2102 = vcombine.high %v2094, %v2094
      %v2103 = vcombine.high %v2101, %v2101
      %2108 = vmatprep.subr.bf16.mxu0 %v1831
      %2109 = vmatpush1.bf16.msra.mxu0 %v1830
      %2110 = vmatprep.subr.bf16.mxu0 %v1839
      %2111 = vmatpush1.bf16.msra.mxu0 %v1838
      %2112 = vmatprep.subr.bf16.mxu0 %v1847
      %2113 = vmatpush1.bf16.msra.mxu0 %v1846
      %2114 = vmatprep.subr.bf16.mxu0 %v1855
      %2115 = vmatpush1.bf16.msra.mxu0 %v1854
      %2116 = vmatprep.subr.bf16.mxu0 %v1863
      %2117 = vmatpush1.bf16.msra.mxu0 %v1862
      %2118 = vmatprep.subr.bf16.mxu0 %v1871
      %2119 = vmatpush1.bf16.msra.mxu0 %v1870
      %2120 = vmatprep.subr.bf16.mxu0 %v1879
      %2121 = vmatpush1.bf16.msra.mxu0 %v1878
      %2122 = vmatprep.subr.bf16.mxu0 %v1887
      %2123 = vmatpush1.bf16.msra.mxu0 %v1886
      %2124 = vmatprep.subr.bf16.mxu0 %v1895
      %2125 = vmatpush1.bf16.msra.mxu0 %v1894
      %2126 = vmatprep.subr.bf16.mxu0 %v1903
      %2127 = vmatpush1.bf16.msra.mxu0 %v1902
      %2128 = vmatprep.subr.bf16.mxu0 %v1911
      %2129 = vmatpush1.bf16.msra.mxu0 %v1910
      %2130 = vmatprep.subr.bf16.mxu0 %v1919
      %2131 = vmatpush1.bf16.msra.mxu0 %v1918
      %2132 = vmatprep.subr.bf16.mxu0 %v1927
      %2133 = vmatpush1.bf16.msra.mxu0 %v1926
      %2134 = vmatprep.subr.bf16.mxu0 %v1935
      %2135 = vmatpush1.bf16.msra.mxu0 %v1934
      %2136 = vmatprep.subr.bf16.mxu0 %v1943
      %2137 = vmatpush1.bf16.msra.mxu0 %v1942
      %2138 = vmatprep.subr.bf16.mxu0 %v1951
      %2139 = vmatpush1.bf16.msra.mxu0 %v1950
      %2140 = vmatprep.mubr.bf16.mxu0 %v2102
      %2141 = vmatmul.mubr.bf16.gmra.mrb[0].mxu0 %v2094
      %v2142 = vpop.f32.mrb[0].mxu0
      %v2143 = vadd.f32 0.0, %v2142
      %v2144 = vpop.f32.mrb[0].mxu0
      %v2145 = vadd.f32 0.0, %v2144
      %v2146 = vpop.f32.mrb[0].mxu0
      %v2147 = vpop.f32.mrb[0].mxu0
      %2148 = vdwg.mxu0
      %2149 = vmatprep.subr.bf16.mxu0 %v1959
      %2150 = vmatpush1.bf16.msra.mxu0 %v1958
      %2151 = vmatprep.subr.bf16.mxu0 %v1967
      %2152 = vmatpush1.bf16.msra.mxu0 %v1966
      %2153 = vmatprep.subr.bf16.mxu0 %v1975
      %2154 = vmatpush1.bf16.msra.mxu0 %v1974
      %2155 = vmatprep.subr.bf16.mxu0 %v1983
      %2156 = vmatpush1.bf16.msra.mxu0 %v1982
      %2157 = vmatprep.subr.bf16.mxu0 %v1991
      %2158 = vmatpush1.bf16.msra.mxu0 %v1990
      %2159 = vmatprep.subr.bf16.mxu0 %v1999
      %2160 = vmatpush1.bf16.msra.mxu0 %v1998
      %2161 = vmatprep.subr.bf16.mxu0 %v2007
      %2162 = vmatpush1.bf16.msra.mxu0 %v2006
      %2163 = vmatprep.subr.bf16.mxu0 %v2015
      %2164 = vmatpush1.bf16.msra.mxu0 %v2014
      %2165 = vmatprep.subr.bf16.mxu0 %v2023
      %2166 = vmatpush1.bf16.msra.mxu0 %v2022
      %2167 = vmatprep.subr.bf16.mxu0 %v2031
      %2168 = vmatpush1.bf16.msra.mxu0 %v2030
      %2169 = vmatprep.subr.bf16.mxu0 %v2039
      %2170 = vmatpush1.bf16.msra.mxu0 %v2038
      %2171 = vmatprep.subr.bf16.mxu0 %v2047
      %2172 = vmatpush1.bf16.msra.mxu0 %v2046
      %2173 = vmatprep.subr.bf16.mxu0 %v2055
      %2174 = vmatpush1.bf16.msra.mxu0 %v2054
      %2175 = vmatprep.subr.bf16.mxu0 %v2063
      %2176 = vmatpush1.bf16.msra.mxu0 %v2062
      %2177 = vmatprep.subr.bf16.mxu0 %v2071
      %2178 = vmatpush1.bf16.msra.mxu0 %v2070
      %2179 = vmatprep.subr.bf16.mxu0 %v2079
      %2180 = vmatpush1.bf16.msra.mxu0 %v2078
      %2181 = vmatprep.mubr.bf16.mxu0 %v2103
      %2182 = vmatmul.mubr.bf16.gmra.mrb[0].mxu0 %v2101
      %v2183 = vpop.f32.mrb[0].mxu0
      %v2184 = vadd.f32 %v2143, %v2183
      %v2185 = vpop.f32.mrb[0].mxu0
      %v2186 = vadd.f32 %v2145, %v2185
      %v2187 = vpop.f32.mrb[0].mxu0
      %v2188 = vpop.f32.mrb[0].mxu0
      %2189 = vdwg.mxu0
      %2190 = vmatprep.subr.bf16.mxu0 %v1833
      %2191 = vmatpush1.bf16.msra.mxu0 %v1832
      %2192 = vmatprep.subr.bf16.mxu0 %v1841
      %2193 = vmatpush1.bf16.msra.mxu0 %v1840
      %2194 = vmatprep.subr.bf16.mxu0 %v1849
      %2195 = vmatpush1.bf16.msra.mxu0 %v1848
      %2196 = vmatprep.subr.bf16.mxu0 %v1857
      %2197 = vmatpush1.bf16.msra.mxu0 %v1856
      %2198 = vmatprep.subr.bf16.mxu0 %v1865
      %2199 = vmatpush1.bf16.msra.mxu0 %v1864
      %2200 = vmatprep.subr.bf16.mxu0 %v1873
      %2201 = vmatpush1.bf16.msra.mxu0 %v1872
      %2202 = vmatprep.subr.bf16.mxu0 %v1881
      %2203 = vmatpush1.bf16.msra.mxu0 %v1880
      %2204 = vmatprep.subr.bf16.mxu0 %v1889
      %2205 = vmatpush1.bf16.msra.mxu0 %v1888
      %2206 = vmatprep.subr.bf16.mxu0 %v1897
      %2207 = vmatpush1.bf16.msra.mxu0 %v1896
      %2208 = vmatprep.subr.bf16.mxu0 %v1905
      %2209 = vmatpush1.bf16.msra.mxu0 %v1904
      %2210 = vmatprep.subr.bf16.mxu0 %v1913
      %2211 = vmatpush1.bf16.msra.mxu0 %v1912
      %2212 = vmatprep.subr.bf16.mxu0 %v1921
      %2213 = vmatpush1.bf16.msra.mxu0 %v1920
      %2214 = vmatprep.subr.bf16.mxu0 %v1929
      %2215 = vmatpush1.bf16.msra.mxu0 %v1928
      %2216 = vmatprep.subr.bf16.mxu0 %v1937
      %2217 = vmatpush1.bf16.msra.mxu0 %v1936
      %2218 = vmatprep.subr.bf16.mxu0 %v1945
      %2219 = vmatpush1.bf16.msra.mxu0 %v1944
      %2220 = vmatprep.subr.bf16.mxu0 %v1953
      %2221 = vmatpush1.bf16.msra.mxu0 %v1952
      %2222 = vmatprep.mubr.bf16.mxu0 %v2102
      %2223 = vmatmul.mubr.bf16.gmra.mrb[0].mxu0 %v2094
      %v2224 = vpop.f32.mrb[0].mxu0
      %v2225 = vadd.f32 0.0, %v2224
      %v2226 = vpop.f32.mrb[0].mxu0
      %v2227 = vadd.f32 0.0, %v2226
      %v2228 = vpop.f32.mrb[0].mxu0
      %v2229 = vpop.f32.mrb[0].mxu0
      %2230 = vdwg.mxu0
      %2231 = vmatprep.subr.bf16.mxu0 %v1961
      %2232 = vmatpush1.bf16.msra.mxu0 %v1960
      %2233 = vmatprep.subr.bf16.mxu0 %v1969
      %2234 = vmatpush1.bf16.msra.mxu0 %v1968
      %2235 = vmatprep.subr.bf16.mxu0 %v1977
      %2236 = vmatpush1.bf16.msra.mxu0 %v1976
      %2237 = vmatprep.subr.bf16.mxu0 %v1985
      %2238 = vmatpush1.bf16.msra.mxu0 %v1984
      %2239 = vmatprep.subr.bf16.mxu0 %v1993
      %2240 = vmatpush1.bf16.msra.mxu0 %v1992
      %2241 = vmatprep.subr.bf16.mxu0 %v2001
      %2242 = vmatpush1.bf16.msra.mxu0 %v2000
      %2243 = vmatprep.subr.bf16.mxu0 %v2009
      %2244 = vmatpush1.bf16.msra.mxu0 %v2008
      %2245 = vmatprep.subr.bf16.mxu0 %v2017
      %2246 = vmatpush1.bf16.msra.mxu0 %v2016
      %2247 = vmatprep.subr.bf16.mxu0 %v2025
      %2248 = vmatpush1.bf16.msra.mxu0 %v2024
      %2249 = vmatprep.subr.bf16.mxu0 %v2033
      %2250 = vmatpush1.bf16.msra.mxu0 %v2032
      %2251 = vmatprep.subr.bf16.mxu0 %v2041
      %2252 = vmatpush1.bf16.msra.mxu0 %v2040
      %2253 = vmatprep.subr.bf16.mxu0 %v2049
      %2254 = vmatpush1.bf16.msra.mxu0 %v2048
      %2255 = vmatprep.subr.bf16.mxu0 %v2057
      %2256 = vmatpush1.bf16.msra.mxu0 %v2056
      %2257 = vmatprep.subr.bf16.mxu0 %v2065
      %2258 = vmatpush1.bf16.msra.mxu0 %v2064
      %2259 = vmatprep.subr.bf16.mxu0 %v2073
      %2260 = vmatpush1.bf16.msra.mxu0 %v2072
      %2261 = vmatprep.subr.bf16.mxu0 %v2081
      %2262 = vmatpush1.bf16.msra.mxu0 %v2080
      %2263 = vmatprep.mubr.bf16.mxu0 %v2103
      %2264 = vmatmul.mubr.bf16.gmra.mrb[0].mxu0 %v2101
      %v2265 = vpop.f32.mrb[0].mxu0
      %v2266 = vadd.f32 %v2225, %v2265
      %v2267 = vpop.f32.mrb[0].mxu0
      %v2268 = vadd.f32 %v2227, %v2267
      %v2269 = vpop.f32.mrb[0].mxu0
      %v2270 = vpop.f32.mrb[0].mxu0
      %2271 = vdwg.mxu0
      %2272 = vmatprep.subr.bf16.mxu0 %v1835
      %2273 = vmatpush1.bf16.msra.mxu0 %v1834
      %2274 = vmatprep.subr.bf16.mxu0 %v1843
      %2275 = vmatpush1.bf16.msra.mxu0 %v1842
      %2276 = vmatprep.subr.bf16.mxu0 %v1851
      %2277 = vmatpush1.bf16.msra.mxu0 %v1850
      %2278 = vmatprep.subr.bf16.mxu0 %v1859
      %2279 = vmatpush1.bf16.msra.mxu0 %v1858
      %2280 = vmatprep.subr.bf16.mxu0 %v1867
      %2281 = vmatpush1.bf16.msra.mxu0 %v1866
      %2282 = vmatprep.subr.bf16.mxu0 %v1875
      %2283 = vmatpush1.bf16.msra.mxu0 %v1874
      %2284 = vmatprep.subr.bf16.mxu0 %v1883
      %2285 = vmatpush1.bf16.msra.mxu0 %v1882
      %2286 = vmatprep.subr.bf16.mxu0 %v1891
      %2287 = vmatpush1.bf16.msra.mxu0 %v1890
      %2288 = vmatprep.subr.bf16.mxu0 %v1899
      %2289 = vmatpush1.bf16.msra.mxu0 %v1898
      %2290 = vmatprep.subr.bf16.mxu0 %v1907
      %2291 = vmatpush1.bf16.msra.mxu0 %v1906
      %2292 = vmatprep.subr.bf16.mxu0 %v1915
      %2293 = vmatpush1.bf16.msra.mxu0 %v1914
      %2294 = vmatprep.subr.bf16.mxu0 %v1923
      %2295 = vmatpush1.bf16.msra.mxu0 %v1922
      %2296 = vmatprep.subr.bf16.mxu0 %v1931
      %2297 = vmatpush1.bf16.msra.mxu0 %v1930
      %2298 = vmatprep.subr.bf16.mxu0 %v1939
      %2299 = vmatpush1.bf16.msra.mxu0 %v1938
      %2300 = vmatprep.subr.bf16.mxu0 %v1947
      %2301 = vmatpush1.bf16.msra.mxu0 %v1946
      %2302 = vmatprep.subr.bf16.mxu0 %v1955
      %2303 = vmatpush1.bf16.msra.mxu0 %v1954
      %2304 = vmatprep.mubr.bf16.mxu0 %v2102
      %2305 = vmatmul.mubr.bf16.gmra.mrb[0].mxu0 %v2094
      %v2306 = vpop.f32.mrb[0].mxu0
      %v2307 = vadd.f32 0.0, %v2306
      %v2308 = vpop.f32.mrb[0].mxu0
      %v2309 = vadd.f32 0.0, %v2308
      %v2310 = vpop.f32.mrb[0].mxu0
      %v2311 = vpop.f32.mrb[0].mxu0
      %2312 = vdwg.mxu0
      %2313 = vmatprep.subr.bf16.mxu0 %v1963
      %2314 = vmatpush1.bf16.msra.mxu0 %v1962
      %2315 = vmatprep.subr.bf16.mxu0 %v1971
      %2316 = vmatpush1.bf16.msra.mxu0 %v1970
      %2317 = vmatprep.subr.bf16.mxu0 %v1979
      %2318 = vmatpush1.bf16.msra.mxu0 %v1978
      %2319 = vmatprep.subr.bf16.mxu0 %v1987
      %2320 = vmatpush1.bf16.msra.mxu0 %v1986
      %2321 = vmatprep.subr.bf16.mxu0 %v1995
      %2322 = vmatpush1.bf16.msra.mxu0 %v1994
      %2323 = vmatprep.subr.bf16.mxu0 %v2003
      %2324 = vmatpush1.bf16.msra.mxu0 %v2002
      %2325 = vmatprep.subr.bf16.mxu0 %v2011
      %2326 = vmatpush1.bf16.msra.mxu0 %v2010
      %2327 = vmatprep.subr.bf16.mxu0 %v2019
      %2328 = vmatpush1.bf16.msra.mxu0 %v2018
      %2329 = vmatprep.subr.bf16.mxu0 %v2027
      %2330 = vmatpush1.bf16.msra.mxu0 %v2026
      %2331 = vmatprep.subr.bf16.mxu0 %v2035
      %2332 = vmatpush1.bf16.msra.mxu0 %v2034
      %2333 = vmatprep.subr.bf16.mxu0 %v2043
      %2334 = vmatpush1.bf16.msra.mxu0 %v2042
      %2335 = vmatprep.subr.bf16.mxu0 %v2051
      %2336 = vmatpush1.bf16.msra.mxu0 %v2050
      %2337 = vmatprep.subr.bf16.mxu0 %v2059
      %2338 = vmatpush1.bf16.msra.mxu0 %v2058
      %2339 = vmatprep.subr.bf16.mxu0 %v2067
      %2340 = vmatpush1.bf16.msra.mxu0 %v2066
      %2341 = vmatprep.subr.bf16.mxu0 %v2075
      %2342 = vmatpush1.bf16.msra.mxu0 %v2074
      %2343 = vmatprep.subr.bf16.mxu0 %v2083
      %2344 = vmatpush1.bf16.msra.mxu0 %v2082
      %2345 = vmatprep.mubr.bf16.mxu0 %v2103
      %2346 = vmatmul.mubr.bf16.gmra.mrb[0].mxu0 %v2101
      %v2347 = vpop.f32.mrb[0].mxu0
      %v2348 = vadd.f32 %v2307, %v2347
      %v2349 = vpop.f32.mrb[0].mxu0
      %v2350 = vadd.f32 %v2309, %v2349
      %v2351 = vpop.f32.mrb[0].mxu0
      %v2352 = vpop.f32.mrb[0].mxu0
      %2353 = vdwg.mxu0
      %2354 = vmatprep.subr.bf16.mxu0 %v1837
      %2355 = vmatpush1.bf16.msra.mxu0 %v1836
      %2356 = vmatprep.subr.bf16.mxu0 %v1845
      %2357 = vmatpush1.bf16.msra.mxu0 %v1844
      %2358 = vmatprep.subr.bf16.mxu0 %v1853
      %2359 = vmatpush1.bf16.msra.mxu0 %v1852
      %2360 = vmatprep.subr.bf16.mxu0 %v1861
      %2361 = vmatpush1.bf16.msra.mxu0 %v1860
      %2362 = vmatprep.subr.bf16.mxu0 %v1869
      %2363 = vmatpush1.bf16.msra.mxu0 %v1868
      %2364 = vmatprep.subr.bf16.mxu0 %v1877
      %2365 = vmatpush1.bf16.msra.mxu0 %v1876
      %2366 = vmatprep.subr.bf16.mxu0 %v1885
      %2367 = vmatpush1.bf16.msra.mxu0 %v1884
      %2368 = vmatprep.subr.bf16.mxu0 %v1893
      %2369 = vmatpush1.bf16.msra.mxu0 %v1892
      %2370 = vmatprep.subr.bf16.mxu0 %v1901
      %2371 = vmatpush1.bf16.msra.mxu0 %v1900
      %2372 = vmatprep.subr.bf16.mxu0 %v1909
      %2373 = vmatpush1.bf16.msra.mxu0 %v1908
      %2374 = vmatprep.subr.bf16.mxu0 %v1917
      %2375 = vmatpush1.bf16.msra.mxu0 %v1916
      %2376 = vmatprep.subr.bf16.mxu0 %v1925
      %2377 = vmatpush1.bf16.msra.mxu0 %v1924
      %2378 = vmatprep.subr.bf16.mxu0 %v1933
      %2379 = vmatpush1.bf16.msra.mxu0 %v1932
      %2380 = vmatprep.subr.bf16.mxu0 %v1941
      %2381 = vmatpush1.bf16.msra.mxu0 %v1940
      %2382 = vmatprep.subr.bf16.mxu0 %v1949
      %2383 = vmatpush1.bf16.msra.mxu0 %v1948
      %2384 = vmatprep.subr.bf16.mxu0 %v1957
      %2385 = vmatpush1.bf16.msra.mxu0 %v1956
      %2386 = vmatprep.mubr.bf16.mxu0 %v2102
      %2387 = vmatmul.mubr.bf16.gmra.mrb[0].mxu0 %v2094
      %v2388 = vpop.f32.mrb[0].mxu0
      %v2389 = vadd.f32 0.0, %v2388
      %v2390 = vpop.f32.mrb[0].mxu0
      %v2391 = vadd.f32 0.0, %v2390
      %v2392 = vpop.f32.mrb[0].mxu0
      %v2393 = vpop.f32.mrb[0].mxu0
      %2394 = vdwg.mxu0
      %2395 = vmatprep.subr.bf16.mxu0 %v1965
      %2396 = vmatpush1.bf16.msra.mxu0 %v1964
      %2397 = vmatprep.subr.bf16.mxu0 %v1973
      %2398 = vmatpush1.bf16.msra.mxu0 %v1972
      %2399 = vmatprep.subr.bf16.mxu0 %v1981
      %2400 = vmatpush1.bf16.msra.mxu0 %v1980
      %2401 = vmatprep.subr.bf16.mxu0 %v1989
      %2402 = vmatpush1.bf16.msra.mxu0 %v1988
      %2403 = vmatprep.subr.bf16.mxu0 %v1997
      %2404 = vmatpush1.bf16.msra.mxu0 %v1996
      %2405 = vmatprep.subr.bf16.mxu0 %v2005
      %2406 = vmatpush1.bf16.msra.mxu0 %v2004
      %2407 = vmatprep.subr.bf16.mxu0 %v2013
      %2408 = vmatpush1.bf16.msra.mxu0 %v2012
      %2409 = vmatprep.subr.bf16.mxu0 %v2021
      %2410 = vmatpush1.bf16.msra.mxu0 %v2020
      %2411 = vmatprep.subr.bf16.mxu0 %v2029
      %2412 = vmatpush1.bf16.msra.mxu0 %v2028
      %2413 = vmatprep.subr.bf16.mxu0 %v2037
      %2414 = vmatpush1.bf16.msra.mxu0 %v2036
      %2415 = vmatprep.subr.bf16.mxu0 %v2045
      %2416 = vmatpush1.bf16.msra.mxu0 %v2044
      %2417 = vmatprep.subr.bf16.mxu0 %v2053
      %2418 = vmatpush1.bf16.msra.mxu0 %v2052
      %2419 = vmatprep.subr.bf16.mxu0 %v2061
      %2420 = vmatpush1.bf16.msra.mxu0 %v2060
      %2421 = vmatprep.subr.bf16.mxu0 %v2069
      %2422 = vmatpush1.bf16.msra.mxu0 %v2068
      %2423 = vmatprep.subr.bf16.mxu0 %v2077
      %2424 = vmatpush1.bf16.msra.mxu0 %v2076
      %2425 = vmatprep.subr.bf16.mxu0 %v2085
      %2426 = vmatpush1.bf16.msra.mxu0 %v2084
      %2427 = vmatprep.mubr.bf16.mxu0 %v2103
      %2428 = vmatmul.mubr.bf16.gmra.mrb[0].mxu0 %v2101
      %v2429 = vpop.f32.mrb[0].mxu0
      %v2430 = vadd.f32 %v2389, %v2429
      %v2431 = vpop.f32.mrb[0].mxu0
      %v2432 = vadd.f32 %v2391, %v2431
      %v2433 = vpop.f32.mrb[0].mxu0
      %v2434 = vpop.f32.mrb[0].mxu0
      %2435 = vdwg.mxu0
      %v2444 = vcombine.low %v2184, %v2186
      %v2445 = vcombine.low %v2266, %v2268
      %v2446 = vcombine.low %v2348, %v2350
      %v2447 = vcombine.low %v2430, %v2432
      %2452 = vst [vmem:[%s178] sm:$0xff] %v2444
      %2453 = vst [vmem:[%s178 + $0x8] sm:$0xff] %v2445
      %2454 = vst [vmem:[%s178 + $0x10] sm:$0xff] %v2446
      %2455 = vst [vmem:[%s178 + $0x18] sm:$0xff] %v2447
      %s2456 = smul.u32 8, %s18
      %p2457 = scmp.lt.s32.totalorder %s17, 15
      %s2458 = scalar_select %p2457, %s17, 15
      %p2459 = scmp.lt.s32.totalorder %s2456, 15
      %s2460 = scalar_select %p2459, %s2456, 15
      %s2461 = smul.addr %s2458, 16
      %s2462 = sadd.s32 %s2460, %s2461
      %s2463 = smul.addr %s2462, 4
      %s2464 = scalar_lea.vmem %s2, %s2463
      // Predicated region
      $region29: #{hdbvlut_forward.1} parent=27 // pred_check
        %p2465 = pneg %p94
      $region30: #{hdbvlut_forward.1} parent=27 // pred_check_branch
        %2467 = sbr.rel (%p2465) target = $region32
      $region31: #{hdbvlut_forward.1} parent=27 // pred_region
        %s2468 = smul.u32 8, %s18
      $region32: #{hdbvlut_forward.1} parent=27 // pred_fallthru
        _
    $region28: #{hdbvlut_forward.1} parent=5 // pred_fallthru
      _
    %p2469 = scmp.le.s32.totalorder 2, %s8
    // Predicated region
    $region33: #{hdbvlut_forward.1} parent=5 // pred_check
      %p2470 = pneg %p2469
    $region34: #{hdbvlut_forward.1} parent=5 // pred_check_branch
      %2472 = sbr.rel (%p2470) target = $region36
    $region35: #{hdbvlut_forward.1} parent=5 // pred_region
      %s2473 = ssub.s32 %s8, 2
      // Predicated region
      $region37: #{hdbvlut_forward.1} parent=35 // pred_check
        %p2474 = pneg %p100
      $region38: #{hdbvlut_forward.1} parent=35 // pred_check_branch
        %2476 = sbr.rel (%p2474) target = $region40
      $region39: #{hdbvlut_forward.1} parent=35 // pred_region
        %s2477 = smul.u32 8, %s20
        %p2478 = scmp.lt.s32.totalorder %s19, 15
        %s2479 = scalar_select %p2478, %s19, 15
        %p2480 = scmp.lt.s32.totalorder %s2477, 15
        %s2481 = scalar_select %p2480, %s2477, 15
        %s2482 = smul.addr %s2479, 16
        %s2483 = sadd.s32 %s2481, %s2482
        %s2484 = smul.addr %s2483, 4
        %s2485 = scalar_lea.vmem %s2, %s2484
      $region40: #{hdbvlut_forward.1} parent=35 // pred_fallthru
        _
    $region36: #{hdbvlut_forward.1} parent=5 // pred_fallthru
      _
  $region6: #{hdbvlut_forward.1} parent=0 // loop_footer
    %s12 = sadd.s32 1, %s8
  $region7: #{hdbvlut_forward.1} parent=0 // loop_footer_branch
    %7 = sbr.rel target = $region3
  $region8: #{hdbvlut_forward.1} parent=0 // loop_exit
    _

</llo_original>
